<compile_context>
chip_gen: v7x
topology: tpu7x:2x2x1
jax: 0.10.0
libtpu: 0.0.40
codegen_flags: <defaults>
</compile_context>

<pallas_src>
import functools

import jax
import jax.numpy as jnp
from jax.experimental import pallas as pl
from jax.experimental.pallas import tpu as pltpu


def mylstm_kernel(x_ref, wproj_ref, w_hh_ref, w1h_ref, w1x_ref, w2_ref, b2_ref, out_ref):
    TB = x_ref.shape[0]
    H = w_hh_ref.shape[0]
    G = 4 * H
    T = wproj_ref.shape[1] // G

    x = x_ref[...]                                    # (TB, T*D + 1) bf16, last column == 1.0

    # Hoisted input projection + bias for ALL timesteps in ONE MXU matmul.
    # wproj is block-diagonal W_ih per step with the (b_ih+b_hh) bias row appended (driven
    # by the ones column of x) and the g-gate columns pre-scaled by 2.
    #   xp[:, t*4H:(t+1)*4H] == x_t @ W_ih' + b'        (' = g-columns scaled by 2)
    xp = jnp.dot(x, wproj_ref[...], preferred_element_type=jnp.float32)   # (TB, T*4H) f32

    w_hh = w_hh_ref[...]                              # (H, 4H) bf16, g columns pre-scaled by 2

    h = jnp.zeros((TB, H), jnp.float32)
    c = jnp.zeros((TB, H), jnp.float32)

    # Static unroll: seq_len is a small compile-time constant.
    for t in range(T):
        gates = xp[:, t * G:(t + 1) * G] + jnp.dot(
            h.astype(jnp.bfloat16), w_hh, preferred_element_type=jnp.float32)  # (TB, 4H)
        # Single whole-block EUP pass (PyTorch gate order: i, f, g, o); g's preactivation
        # was pre-doubled so tanh(a_g) == 2*sigmoid(2*a_g) - 1.
        sig = jax.nn.sigmoid(gates)
        i = sig[:, 0 * H:1 * H]
        f = sig[:, 1 * H:2 * H]
        g = 2.0 * sig[:, 2 * H:3 * H] - 1.0
        o = sig[:, 3 * H:4 * H]
        c = f * c + i * g
        h = o * jnp.tanh(c)

    # MergeLayer: fc2(relu(fc1(cat([h_n, x], dim=1)))).  fc1's weight is pre-split so the
    # concat becomes two matmuls; fc1's bias rides on the ones column of x (folded into w1x).
    h1 = (jnp.dot(h.astype(jnp.bfloat16), w1h_ref[...], preferred_element_type=jnp.float32)
          + jnp.dot(x, w1x_ref[...], preferred_element_type=jnp.float32))
    h1 = jnp.maximum(h1, 0.0)                         # ReLU
    out = jnp.dot(h1.astype(jnp.bfloat16), w2_ref[...],
                  preferred_element_type=jnp.float32) + b2_ref[...]
    out_ref[...] = out.astype(out_ref.dtype)


def init_params(key, seq_len, input_dim, hidden_dim):
    """PyTorch-style f32 parameters (used by the pure-JAX reference)."""
    H = hidden_dim
    ks = jax.random.split(key, 8)
    k = 1.0 / jnp.sqrt(H)
    # nn.LSTM params (PyTorch layout (4H, in) / (4H, H)), stored pre-transposed.
    w_ih = jax.random.uniform(ks[0], (4 * H, input_dim), jnp.float32, -k, k).T  # (D, 4H)
    w_hh = jax.random.uniform(ks[1], (4 * H, H), jnp.float32, -k, k).T          # (H, 4H)
    b_ih = jax.random.uniform(ks[2], (4 * H,), jnp.float32, -k, k)
    b_hh = jax.random.uniform(ks[3], (4 * H,), jnp.float32, -k, k)
    b = (b_ih + b_hh).reshape(1, 4 * H)
    # MergeLayer fc1 (2H -> H), fc2 (H -> H): xavier-normal weights, uniform biases.
    std1 = jnp.sqrt(2.0 / (2 * H + H))
    std2 = jnp.sqrt(2.0 / (H + H))
    w1 = (jax.random.normal(ks[4], (H, 2 * H), jnp.float32) * std1).T           # (2H, H)
    w2 = (jax.random.normal(ks[5], (H, H), jnp.float32) * std2).T               # (H, H)
    kb1 = 1.0 / jnp.sqrt(2 * H)
    kb2 = 1.0 / jnp.sqrt(H)
    b1 = jax.random.uniform(ks[6], (1, H), jnp.float32, -kb1, kb1)
    b2 = jax.random.uniform(ks[7], (1, H), jnp.float32, -kb2, kb2)
    return dict(w_ih=w_ih, w_hh=w_hh, b=b, w1=w1, b1=b1, w2=w2, b2=b2)


def prepare_kernel_params(params, seq_len, input_dim, hidden_dim):
    """One-time prep: hoisted block-diag projection with folded bias row, 2x-scaled g-gate
    columns (tanh elimination), pre-split fc1 with folded b1, bf16 matmul operands."""
    H = hidden_dim
    D = input_dim
    T = seq_len
    G = 4 * H
    # Pre-scale g-gate columns (2H:3H of every 4H block) by 2: tanh(x) = 2*sigmoid(2x) - 1.
    gscale = jnp.ones((1, G), jnp.float32).at[:, 2 * H:3 * H].set(2.0)
    w_ih_s = params["w_ih"] * gscale                  # (D, 4H)
    w_hh_s = params["w_hh"] * gscale                  # (H, 4H)
    b_s = params["b"] * gscale                        # (1, 4H)
    # Block-diagonal projection: x_aug (B, T*D+1) @ wproj (T*D+1, T*4H) computes every
    # timestep's input projection AND bias in one matmul (zero blocks contribute exact
    # zeros; the last row is the bias, driven by the ones column of x_aug).
    # NOTE: 7/8 of wproj is zeros — redundant MXU FLOPs, negligible at T*4H=1024; revisit
    # (reshape x to (TB*T, D) batching) if seq_len/hidden_dim ever grow.
    wproj = jnp.zeros((T * D + 1, T * G), jnp.float32)
    for t in range(T):
        wproj = wproj.at[t * D:(t + 1) * D, t * G:(t + 1) * G].set(w_ih_s)
        wproj = wproj.at[T * D, t * G:(t + 1) * G].set(b_s[0])
    w1 = params["w1"]                                 # (2H, H)
    # fc1: cat([h, x]) @ W1 + b1 = h @ W1[:H] + x_aug @ [W1[H:]; b1].
    w1x_aug = jnp.concatenate([w1[H:, :], params["b1"]], axis=0)   # (H+1, H)
    return dict(
        wproj=wproj.astype(jnp.bfloat16),
        w_hh=w_hh_s.astype(jnp.bfloat16),
        w1h=w1[:H, :].astype(jnp.bfloat16),
        w1x=w1x_aug.astype(jnp.bfloat16),
        w2=params["w2"].astype(jnp.bfloat16),
        b2=params["b2"].astype(jnp.float32),
    )


@functools.partial(jax.jit, static_argnames=("seq_len", "input_dim", "hidden_dim", "block_b"))
def mylstm_forward(x, kparams, seq_len, input_dim, hidden_dim, block_b=512):
    B, F = x.shape
    H = hidden_dim
    G4 = 4 * H
    assert F == seq_len * input_dim == hidden_dim, \
        "module requires seq_len * input_dim == hidden_dim (concat in MergeLayer)"

    def round_up(a, m):
        return ((a + m - 1) // m) * m

    # Batch tile selection:
    #  * large tiles (default 512 rows) so every serial h@W_hh step feeds full-width MXU
    #    passes and per-grid-step overhead is amortised;
    #  * for 16 <= B <= 2*block_b force >= 2 grid steps so the "parallel" axis spans both
    #    TensorCores on v7x;
    #  * tiny batches collapse to one 8-sublane tile.
    if B < 16:
        TB = max(8, round_up(B, 8))
    elif B <= 2 * block_b:
        TB = round_up((B + 1) // 2, 8)
    else:
        TB = block_b
    Bp = round_up(B, TB)
    nb = Bp // TB

    # Append the ones column (drives the folded LSTM bias row and fc1 bias row), cast to
    # the bf16 MXU operand dtype, pad batch to a multiple of TB (padded rows are junk and
    # sliced off at the end).
    xb = jnp.concatenate([x, jnp.ones((B, 1), x.dtype)], axis=1).astype(jnp.bfloat16)
    if Bp != B:
        xb = jnp.pad(xb, ((0, Bp - B), (0, 0)))

    grid_spec = pltpu.PrefetchScalarGridSpec(
        num_scalar_prefetch=0,
        grid=(nb,),
        in_specs=[
            pl.BlockSpec((TB, F + 1), lambda i: (i, 0)),            # x (+ones col), batch-tiled
            pl.BlockSpec((F + 1, seq_len * G4), lambda i: (0, 0)),  # wproj (resident)
            pl.BlockSpec((H, G4), lambda i: (0, 0)),                # w_hh
            pl.BlockSpec((H, H), lambda i: (0, 0)),                 # w1h
            pl.BlockSpec((F + 1, H), lambda i: (0, 0)),             # w1x (+ b1 row)
            pl.BlockSpec((H, H), lambda i: (0, 0)),                 # w2
            pl.BlockSpec((1, H), lambda i: (0, 0)),                 # b2
        ],
        out_specs=pl.BlockSpec((TB, H), lambda i: (i, 0)),
    )
    out = pl.pallas_call(
        mylstm_kernel,
        out_shape=jax.ShapeDtypeStruct((Bp, H), jnp.float32),
        grid_spec=grid_spec,
        compiler_params=pltpu.CompilerParams(dimension_semantics=("parallel",)),
    )(xb, kparams["wproj"], kparams["w_hh"], kparams["w1h"], kparams["w1x"],
      kparams["w2"], kparams["b2"])
    return out[:B]


def mylstm_reference(x, params, seq_len, input_dim, hidden_dim, matmul_dtype=jnp.float32):
    """Pure-JAX reference; matmul_dtype=bfloat16 mirrors the kernel's MXU operand dtype."""
    B = x.shape[0]
    H = hidden_dim

    def mm(a, w):
        return jnp.dot(a.astype(matmul_dtype), w.astype(matmul_dtype),
                       preferred_element_type=jnp.float32)

    x_seq = x.reshape(B, seq_len, input_dim)
    h = jnp.zeros((B, H), jnp.float32)
    c = jnp.zeros((B, H), jnp.float32)
    for t in range(seq_len):
        gates = mm(x_seq[:, t, :], params["w_ih"]) + mm(h, params["w_hh"]) + params["b"]
        i = jax.nn.sigmoid(gates[:, 0 * H:1 * H])
        f = jax.nn.sigmoid(gates[:, 1 * H:2 * H])
        g = jnp.tanh(gates[:, 2 * H:3 * H])
        o = jax.nn.sigmoid(gates[:, 3 * H:4 * H])
        c = f * c + i * g
        h = o * jnp.tanh(c)
    hx = jnp.concatenate([h, x], axis=1)
    h1 = jnp.maximum(mm(hx, params["w1"]) + params["b1"], 0.0)
    return mm(h1, params["w2"]) + params["b2"]


if __name__ == "__main__":
    seq_len, input_dim, hidden_dim = 8, 4, 32   # module requires seq_len*input_dim == hidden_dim
    batch = 2

    key = jax.random.PRNGKey(0)
    kx, kp = jax.random.split(key)
    x = jax.random.normal(kx, (batch, seq_len * input_dim), jnp.float32)
    params = init_params(kp, seq_len, input_dim, hidden_dim)
    kparams = prepare_kernel_params(params, seq_len, input_dim, hidden_dim)

    out = mylstm_forward(x, kparams, seq_len, input_dim, hidden_dim)
    out = jax.block_until_ready(out)

    ref_bf16 = mylstm_reference(x, params, seq_len, input_dim, hidden_dim, jnp.bfloat16)
    ref_f32 = mylstm_reference(x, params, seq_len, input_dim, hidden_dim, jnp.float32)
    assert out.shape == (batch, hidden_dim)
    assert jnp.allclose(out, ref_bf16, atol=2e-2, rtol=2e-2), "mismatch vs. bf16-matched reference"
    assert jnp.allclose(out, ref_f32, atol=5e-2, rtol=5e-2), "mismatch vs. f32 reference"

    print("KERNEL_OK")
</pallas_src>

<mosaic_0001>
module attributes {stable_mosaic.version = 11 : i64} {
  func.func @mylstm_kernel(%arg0: i32, %arg1: memref<8x33xbf16, #tpu.memory_space<vmem>>, %arg2: memref<33x1024xbf16, #tpu.memory_space<vmem>>, %arg3: memref<32x128xbf16, #tpu.memory_space<vmem>>, %arg4: memref<32x32xbf16, #tpu.memory_space<vmem>>, %arg5: memref<33x32xbf16, #tpu.memory_space<vmem>>, %arg6: memref<32x32xbf16, #tpu.memory_space<vmem>>, %arg7: memref<1x32xf32, #tpu.memory_space<vmem>>, %arg8: memref<8x32xf32, #tpu.memory_space<vmem>>) attributes {dimension_semantics = [#tpu.dimension_semantics<parallel>], iteration_bounds = array<i64: 1>, scalar_prefetch = 0 : i64, scratch_operands = 0 : i64, tpu.core_type = #tpu.core_type<tc>, window_params = [{transform_indices = @transform_0, window_bounds = array<i64: 8, 33>}, {pipeline_mode = #tpu.pipeline_mode<synchronous>, transform_indices = @transform_1, window_bounds = array<i64: 33, 1024>}, {pipeline_mode = #tpu.pipeline_mode<synchronous>, transform_indices = @transform_2, window_bounds = array<i64: 32, 128>}, {pipeline_mode = #tpu.pipeline_mode<synchronous>, transform_indices = @transform_3, window_bounds = array<i64: 32, 32>}, {pipeline_mode = #tpu.pipeline_mode<synchronous>, transform_indices = @transform_4, window_bounds = array<i64: 33, 32>}, {pipeline_mode = #tpu.pipeline_mode<synchronous>, transform_indices = @transform_5, window_bounds = array<i64: 32, 32>}, {pipeline_mode = #tpu.pipeline_mode<synchronous>, transform_indices = @transform_6, window_bounds = array<i64: 1, 32>}, {transform_indices = @transform_7, window_bounds = array<i64: 8, 32>}]} {
    %c0 = arith.constant 0 : index
    %c0_0 = arith.constant 0 : index
    %0 = vector.load %arg1[%c0, %c0_0] : memref<8x33xbf16, #tpu.memory_space<vmem>>, vector<8x33xbf16>
    %c0_1 = arith.constant 0 : index
    %c0_2 = arith.constant 0 : index
    %1 = vector.load %arg2[%c0_1, %c0_2] : memref<33x1024xbf16, #tpu.memory_space<vmem>>, vector<33x1024xbf16>
    %cst = arith.constant dense<0.000000e+00> : vector<8x1024xf32>
    %2 = tpu.matmul %0, %1, %cst {dimension_numbers = #tpu.dot_dimension_numbers<[1], [0], [0], [1], [0, 0, 1, 1], [], []>} : vector<8x33xbf16>, vector<33x1024xbf16>, vector<8x1024xf32> -> vector<8x1024xf32>
    %c0_3 = arith.constant 0 : index
    %c0_4 = arith.constant 0 : index
    %3 = vector.load %arg3[%c0_3, %c0_4] : memref<32x128xbf16, #tpu.memory_space<vmem>>, vector<32x128xbf16>
    %cst_5 = arith.constant 0.000000e+00 : f32
    %4 = vector.broadcast %cst_5 : f32 to vector<8x32xf32>
    %cst_6 = arith.constant 0.000000e+00 : f32
    %5 = vector.broadcast %cst_6 : f32 to vector<8x32xf32>
    %6 = vector.extract_strided_slice %2 {offsets = [0, 0], sizes = [8, 128], strides = [1, 1]} : vector<8x1024xf32> to vector<8x128xf32>
    %7 = arith.truncf %4 : vector<8x32xf32> to vector<8x32xbf16>
    %cst_7 = arith.constant dense<0.000000e+00> : vector<8x128xf32>
    %8 = tpu.matmul %7, %3, %cst_7 {dimension_numbers = #tpu.dot_dimension_numbers<[1], [0], [0], [1], [0, 0, 1, 1], [], []>} : vector<8x32xbf16>, vector<32x128xbf16>, vector<8x128xf32> -> vector<8x128xf32>
    %9 = arith.addf %6, %8 : vector<8x128xf32>
    %10 = arith.negf %9 : vector<8x128xf32>
    %11 = math.exp %10 : vector<8x128xf32>
    %cst_8 = arith.constant 1.000000e+00 : f32
    %12 = vector.broadcast %cst_8 : f32 to vector<8x128xf32>
    %13 = arith.addf %12, %11 : vector<8x128xf32>
    %14 = arith.divf %12, %13 : vector<8x128xf32>
    %15 = vector.extract_strided_slice %14 {offsets = [0, 0], sizes = [8, 32], strides = [1, 1]} : vector<8x128xf32> to vector<8x32xf32>
    %16 = vector.extract_strided_slice %14 {offsets = [0, 32], sizes = [8, 32], strides = [1, 1]} : vector<8x128xf32> to vector<8x32xf32>
    %17 = vector.extract_strided_slice %14 {offsets = [0, 64], sizes = [8, 32], strides = [1, 1]} : vector<8x128xf32> to vector<8x32xf32>
    %cst_9 = arith.constant 2.000000e+00 : f32
    %18 = vector.broadcast %cst_9 : f32 to vector<8x32xf32>
    %19 = arith.mulf %18, %17 : vector<8x32xf32>
    %cst_10 = arith.constant 1.000000e+00 : f32
    %20 = vector.broadcast %cst_10 : f32 to vector<8x32xf32>
    %21 = arith.subf %19, %20 : vector<8x32xf32>
    %22 = vector.extract_strided_slice %14 {offsets = [0, 96], sizes = [8, 32], strides = [1, 1]} : vector<8x128xf32> to vector<8x32xf32>
    %23 = arith.mulf %16, %5 : vector<8x32xf32>
    %24 = arith.mulf %15, %21 : vector<8x32xf32>
    %25 = arith.addf %23, %24 : vector<8x32xf32>
    %26 = math.tanh %25 : vector<8x32xf32>
    %27 = arith.mulf %22, %26 : vector<8x32xf32>
    %28 = vector.extract_strided_slice %2 {offsets = [0, 128], sizes = [8, 128], strides = [1, 1]} : vector<8x1024xf32> to vector<8x128xf32>
    %29 = arith.truncf %27 : vector<8x32xf32> to vector<8x32xbf16>
    %cst_11 = arith.constant dense<0.000000e+00> : vector<8x128xf32>
    %30 = tpu.matmul %29, %3, %cst_11 {dimension_numbers = #tpu.dot_dimension_numbers<[1], [0], [0], [1], [0, 0, 1, 1], [], []>} : vector<8x32xbf16>, vector<32x128xbf16>, vector<8x128xf32> -> vector<8x128xf32>
    %31 = arith.addf %28, %30 : vector<8x128xf32>
    %32 = arith.negf %31 : vector<8x128xf32>
    %33 = math.exp %32 : vector<8x128xf32>
    %cst_12 = arith.constant 1.000000e+00 : f32
    %34 = vector.broadcast %cst_12 : f32 to vector<8x128xf32>
    %35 = arith.addf %34, %33 : vector<8x128xf32>
    %36 = arith.divf %34, %35 : vector<8x128xf32>
    %37 = vector.extract_strided_slice %36 {offsets = [0, 0], sizes = [8, 32], strides = [1, 1]} : vector<8x128xf32> to vector<8x32xf32>
    %38 = vector.extract_strided_slice %36 {offsets = [0, 32], sizes = [8, 32], strides = [1, 1]} : vector<8x128xf32> to vector<8x32xf32>
    %39 = vector.extract_strided_slice %36 {offsets = [0, 64], sizes = [8, 32], strides = [1, 1]} : vector<8x128xf32> to vector<8x32xf32>
    %cst_13 = arith.constant 2.000000e+00 : f32
    %40 = vector.broadcast %cst_13 : f32 to vector<8x32xf32>
    %41 = arith.mulf %40, %39 : vector<8x32xf32>
    %cst_14 = arith.constant 1.000000e+00 : f32
    %42 = vector.broadcast %cst_14 : f32 to vector<8x32xf32>
    %43 = arith.subf %41, %42 : vector<8x32xf32>
    %44 = vector.extract_strided_slice %36 {offsets = [0, 96], sizes = [8, 32], strides = [1, 1]} : vector<8x128xf32> to vector<8x32xf32>
    %45 = arith.mulf %38, %25 : vector<8x32xf32>
    %46 = arith.mulf %37, %43 : vector<8x32xf32>
    %47 = arith.addf %45, %46 : vector<8x32xf32>
    %48 = math.tanh %47 : vector<8x32xf32>
    %49 = arith.mulf %44, %48 : vector<8x32xf32>
    %50 = vector.extract_strided_slice %2 {offsets = [0, 256], sizes = [8, 128], strides = [1, 1]} : vector<8x1024xf32> to vector<8x128xf32>
    %51 = arith.truncf %49 : vector<8x32xf32> to vector<8x32xbf16>
    %cst_15 = arith.constant dense<0.000000e+00> : vector<8x128xf32>
    %52 = tpu.matmul %51, %3, %cst_15 {dimension_numbers = #tpu.dot_dimension_numbers<[1], [0], [0], [1], [0, 0, 1, 1], [], []>} : vector<8x32xbf16>, vector<32x128xbf16>, vector<8x128xf32> -> vector<8x128xf32>
    %53 = arith.addf %50, %52 : vector<8x128xf32>
    %54 = arith.negf %53 : vector<8x128xf32>
    %55 = math.exp %54 : vector<8x128xf32>
    %cst_16 = arith.constant 1.000000e+00 : f32
    %56 = vector.broadcast %cst_16 : f32 to vector<8x128xf32>
    %57 = arith.addf %56, %55 : vector<8x128xf32>
    %58 = arith.divf %56, %57 : vector<8x128xf32>
    %59 = vector.extract_strided_slice %58 {offsets = [0, 0], sizes = [8, 32], strides = [1, 1]} : vector<8x128xf32> to vector<8x32xf32>
    %60 = vector.extract_strided_slice %58 {offsets = [0, 32], sizes = [8, 32], strides = [1, 1]} : vector<8x128xf32> to vector<8x32xf32>
    %61 = vector.extract_strided_slice %58 {offsets = [0, 64], sizes = [8, 32], strides = [1, 1]} : vector<8x128xf32> to vector<8x32xf32>
    %cst_17 = arith.constant 2.000000e+00 : f32
    %62 = vector.broadcast %cst_17 : f32 to vector<8x32xf32>
    %63 = arith.mulf %62, %61 : vector<8x32xf32>
    %cst_18 = arith.constant 1.000000e+00 : f32
    %64 = vector.broadcast %cst_18 : f32 to vector<8x32xf32>
    %65 = arith.subf %63, %64 : vector<8x32xf32>
    %66 = vector.extract_strided_slice %58 {offsets = [0, 96], sizes = [8, 32], strides = [1, 1]} : vector<8x128xf32> to vector<8x32xf32>
    %67 = arith.mulf %60, %47 : vector<8x32xf32>
    %68 = arith.mulf %59, %65 : vector<8x32xf32>
    %69 = arith.addf %67, %68 : vector<8x32xf32>
    %70 = math.tanh %69 : vector<8x32xf32>
    %71 = arith.mulf %66, %70 : vector<8x32xf32>
    %72 = vector.extract_strided_slice %2 {offsets = [0, 384], sizes = [8, 128], strides = [1, 1]} : vector<8x1024xf32> to vector<8x128xf32>
    %73 = arith.truncf %71 : vector<8x32xf32> to vector<8x32xbf16>
    %cst_19 = arith.constant dense<0.000000e+00> : vector<8x128xf32>
    %74 = tpu.matmul %73, %3, %cst_19 {dimension_numbers = #tpu.dot_dimension_numbers<[1], [0], [0], [1], [0, 0, 1, 1], [], []>} : vector<8x32xbf16>, vector<32x128xbf16>, vector<8x128xf32> -> vector<8x128xf32>
    %75 = arith.addf %72, %74 : vector<8x128xf32>
    %76 = arith.negf %75 : vector<8x128xf32>
    %77 = math.exp %76 : vector<8x128xf32>
    %cst_20 = arith.constant 1.000000e+00 : f32
    %78 = vector.broadcast %cst_20 : f32 to vector<8x128xf32>
    %79 = arith.addf %78, %77 : vector<8x128xf32>
    %80 = arith.divf %78, %79 : vector<8x128xf32>
    %81 = vector.extract_strided_slice %80 {offsets = [0, 0], sizes = [8, 32], strides = [1, 1]} : vector<8x128xf32> to vector<8x32xf32>
    %82 = vector.extract_strided_slice %80 {offsets = [0, 32], sizes = [8, 32], strides = [1, 1]} : vector<8x128xf32> to vector<8x32xf32>
    %83 = vector.extract_strided_slice %80 {offsets = [0, 64], sizes = [8, 32], strides = [1, 1]} : vector<8x128xf32> to vector<8x32xf32>
    %cst_21 = arith.constant 2.000000e+00 : f32
    %84 = vector.broadcast %cst_21 : f32 to vector<8x32xf32>
    %85 = arith.mulf %84, %83 : vector<8x32xf32>
    %cst_22 = arith.constant 1.000000e+00 : f32
    %86 = vector.broadcast %cst_22 : f32 to vector<8x32xf32>
    %87 = arith.subf %85, %86 : vector<8x32xf32>
    %88 = vector.extract_strided_slice %80 {offsets = [0, 96], sizes = [8, 32], strides = [1, 1]} : vector<8x128xf32> to vector<8x32xf32>
    %89 = arith.mulf %82, %69 : vector<8x32xf32>
    %90 = arith.mulf %81, %87 : vector<8x32xf32>
    %91 = arith.addf %89, %90 : vector<8x32xf32>
    %92 = math.tanh %91 : vector<8x32xf32>
    %93 = arith.mulf %88, %92 : vector<8x32xf32>
    %94 = vector.extract_strided_slice %2 {offsets = [0, 512], sizes = [8, 128], strides = [1, 1]} : vector<8x1024xf32> to vector<8x128xf32>
    %95 = arith.truncf %93 : vector<8x32xf32> to vector<8x32xbf16>
    %cst_23 = arith.constant dense<0.000000e+00> : vector<8x128xf32>
    %96 = tpu.matmul %95, %3, %cst_23 {dimension_numbers = #tpu.dot_dimension_numbers<[1], [0], [0], [1], [0, 0, 1, 1], [], []>} : vector<8x32xbf16>, vector<32x128xbf16>, vector<8x128xf32> -> vector<8x128xf32>
    %97 = arith.addf %94, %96 : vector<8x128xf32>
    %98 = arith.negf %97 : vector<8x128xf32>
    %99 = math.exp %98 : vector<8x128xf32>
    %cst_24 = arith.constant 1.000000e+00 : f32
    %100 = vector.broadcast %cst_24 : f32 to vector<8x128xf32>
    %101 = arith.addf %100, %99 : vector<8x128xf32>
    %102 = arith.divf %100, %101 : vector<8x128xf32>
    %103 = vector.extract_strided_slice %102 {offsets = [0, 0], sizes = [8, 32], strides = [1, 1]} : vector<8x128xf32> to vector<8x32xf32>
    %104 = vector.extract_strided_slice %102 {offsets = [0, 32], sizes = [8, 32], strides = [1, 1]} : vector<8x128xf32> to vector<8x32xf32>
    %105 = vector.extract_strided_slice %102 {offsets = [0, 64], sizes = [8, 32], strides = [1, 1]} : vector<8x128xf32> to vector<8x32xf32>
    %cst_25 = arith.constant 2.000000e+00 : f32
    %106 = vector.broadcast %cst_25 : f32 to vector<8x32xf32>
    %107 = arith.mulf %106, %105 : vector<8x32xf32>
    %cst_26 = arith.constant 1.000000e+00 : f32
    %108 = vector.broadcast %cst_26 : f32 to vector<8x32xf32>
    %109 = arith.subf %107, %108 : vector<8x32xf32>
    %110 = vector.extract_strided_slice %102 {offsets = [0, 96], sizes = [8, 32], strides = [1, 1]} : vector<8x128xf32> to vector<8x32xf32>
    %111 = arith.mulf %104, %91 : vector<8x32xf32>
    %112 = arith.mulf %103, %109 : vector<8x32xf32>
    %113 = arith.addf %111, %112 : vector<8x32xf32>
    %114 = math.tanh %113 : vector<8x32xf32>
    %115 = arith.mulf %110, %114 : vector<8x32xf32>
    %116 = vector.extract_strided_slice %2 {offsets = [0, 640], sizes = [8, 128], strides = [1, 1]} : vector<8x1024xf32> to vector<8x128xf32>
    %117 = arith.truncf %115 : vector<8x32xf32> to vector<8x32xbf16>
    %cst_27 = arith.constant dense<0.000000e+00> : vector<8x128xf32>
    %118 = tpu.matmul %117, %3, %cst_27 {dimension_numbers = #tpu.dot_dimension_numbers<[1], [0], [0], [1], [0, 0, 1, 1], [], []>} : vector<8x32xbf16>, vector<32x128xbf16>, vector<8x128xf32> -> vector<8x128xf32>
    %119 = arith.addf %116, %118 : vector<8x128xf32>
    %120 = arith.negf %119 : vector<8x128xf32>
    %121 = math.exp %120 : vector<8x128xf32>
    %cst_28 = arith.constant 1.000000e+00 : f32
    %122 = vector.broadcast %cst_28 : f32 to vector<8x128xf32>
    %123 = arith.addf %122, %121 : vector<8x128xf32>
    %124 = arith.divf %122, %123 : vector<8x128xf32>
    %125 = vector.extract_strided_slice %124 {offsets = [0, 0], sizes = [8, 32], strides = [1, 1]} : vector<8x128xf32> to vector<8x32xf32>
    %126 = vector.extract_strided_slice %124 {offsets = [0, 32], sizes = [8, 32], strides = [1, 1]} : vector<8x128xf32> to vector<8x32xf32>
    %127 = vector.extract_strided_slice %124 {offsets = [0, 64], sizes = [8, 32], strides = [1, 1]} : vector<8x128xf32> to vector<8x32xf32>
    %cst_29 = arith.constant 2.000000e+00 : f32
    %128 = vector.broadcast %cst_29 : f32 to vector<8x32xf32>
    %129 = arith.mulf %128, %127 : vector<8x32xf32>
    %cst_30 = arith.constant 1.000000e+00 : f32
    %130 = vector.broadcast %cst_30 : f32 to vector<8x32xf32>
    %131 = arith.subf %129, %130 : vector<8x32xf32>
    %132 = vector.extract_strided_slice %124 {offsets = [0, 96], sizes = [8, 32], strides = [1, 1]} : vector<8x128xf32> to vector<8x32xf32>
    %133 = arith.mulf %126, %113 : vector<8x32xf32>
    %134 = arith.mulf %125, %131 : vector<8x32xf32>
    %135 = arith.addf %133, %134 : vector<8x32xf32>
    %136 = math.tanh %135 : vector<8x32xf32>
    %137 = arith.mulf %132, %136 : vector<8x32xf32>
    %138 = vector.extract_strided_slice %2 {offsets = [0, 768], sizes = [8, 128], strides = [1, 1]} : vector<8x1024xf32> to vector<8x128xf32>
    %139 = arith.truncf %137 : vector<8x32xf32> to vector<8x32xbf16>
    %cst_31 = arith.constant dense<0.000000e+00> : vector<8x128xf32>
    %140 = tpu.matmul %139, %3, %cst_31 {dimension_numbers = #tpu.dot_dimension_numbers<[1], [0], [0], [1], [0, 0, 1, 1], [], []>} : vector<8x32xbf16>, vector<32x128xbf16>, vector<8x128xf32> -> vector<8x128xf32>
    %141 = arith.addf %138, %140 : vector<8x128xf32>
    %142 = arith.negf %141 : vector<8x128xf32>
    %143 = math.exp %142 : vector<8x128xf32>
    %cst_32 = arith.constant 1.000000e+00 : f32
    %144 = vector.broadcast %cst_32 : f32 to vector<8x128xf32>
    %145 = arith.addf %144, %143 : vector<8x128xf32>
    %146 = arith.divf %144, %145 : vector<8x128xf32>
    %147 = vector.extract_strided_slice %146 {offsets = [0, 0], sizes = [8, 32], strides = [1, 1]} : vector<8x128xf32> to vector<8x32xf32>
    %148 = vector.extract_strided_slice %146 {offsets = [0, 32], sizes = [8, 32], strides = [1, 1]} : vector<8x128xf32> to vector<8x32xf32>
    %149 = vector.extract_strided_slice %146 {offsets = [0, 64], sizes = [8, 32], strides = [1, 1]} : vector<8x128xf32> to vector<8x32xf32>
    %cst_33 = arith.constant 2.000000e+00 : f32
    %150 = vector.broadcast %cst_33 : f32 to vector<8x32xf32>
    %151 = arith.mulf %150, %149 : vector<8x32xf32>
    %cst_34 = arith.constant 1.000000e+00 : f32
    %152 = vector.broadcast %cst_34 : f32 to vector<8x32xf32>
    %153 = arith.subf %151, %152 : vector<8x32xf32>
    %154 = vector.extract_strided_slice %146 {offsets = [0, 96], sizes = [8, 32], strides = [1, 1]} : vector<8x128xf32> to vector<8x32xf32>
    %155 = arith.mulf %148, %135 : vector<8x32xf32>
    %156 = arith.mulf %147, %153 : vector<8x32xf32>
    %157 = arith.addf %155, %156 : vector<8x32xf32>
    %158 = math.tanh %157 : vector<8x32xf32>
    %159 = arith.mulf %154, %158 : vector<8x32xf32>
    %160 = vector.extract_strided_slice %2 {offsets = [0, 896], sizes = [8, 128], strides = [1, 1]} : vector<8x1024xf32> to vector<8x128xf32>
    %161 = arith.truncf %159 : vector<8x32xf32> to vector<8x32xbf16>
    %cst_35 = arith.constant dense<0.000000e+00> : vector<8x128xf32>
    %162 = tpu.matmul %161, %3, %cst_35 {dimension_numbers = #tpu.dot_dimension_numbers<[1], [0], [0], [1], [0, 0, 1, 1], [], []>} : vector<8x32xbf16>, vector<32x128xbf16>, vector<8x128xf32> -> vector<8x128xf32>
    %163 = arith.addf %160, %162 : vector<8x128xf32>
    %164 = arith.negf %163 : vector<8x128xf32>
    %165 = math.exp %164 : vector<8x128xf32>
    %cst_36 = arith.constant 1.000000e+00 : f32
    %166 = vector.broadcast %cst_36 : f32 to vector<8x128xf32>
    %167 = arith.addf %166, %165 : vector<8x128xf32>
    %168 = arith.divf %166, %167 : vector<8x128xf32>
    %169 = vector.extract_strided_slice %168 {offsets = [0, 0], sizes = [8, 32], strides = [1, 1]} : vector<8x128xf32> to vector<8x32xf32>
    %170 = vector.extract_strided_slice %168 {offsets = [0, 32], sizes = [8, 32], strides = [1, 1]} : vector<8x128xf32> to vector<8x32xf32>
    %171 = vector.extract_strided_slice %168 {offsets = [0, 64], sizes = [8, 32], strides = [1, 1]} : vector<8x128xf32> to vector<8x32xf32>
    %cst_37 = arith.constant 2.000000e+00 : f32
    %172 = vector.broadcast %cst_37 : f32 to vector<8x32xf32>
    %173 = arith.mulf %172, %171 : vector<8x32xf32>
    %cst_38 = arith.constant 1.000000e+00 : f32
    %174 = vector.broadcast %cst_38 : f32 to vector<8x32xf32>
    %175 = arith.subf %173, %174 : vector<8x32xf32>
    %176 = vector.extract_strided_slice %168 {offsets = [0, 96], sizes = [8, 32], strides = [1, 1]} : vector<8x128xf32> to vector<8x32xf32>
    %177 = arith.mulf %170, %157 : vector<8x32xf32>
    %178 = arith.mulf %169, %175 : vector<8x32xf32>
    %179 = arith.addf %177, %178 : vector<8x32xf32>
    %180 = math.tanh %179 : vector<8x32xf32>
    %181 = arith.mulf %176, %180 : vector<8x32xf32>
    %182 = arith.truncf %181 : vector<8x32xf32> to vector<8x32xbf16>
    %c0_39 = arith.constant 0 : index
    %c0_40 = arith.constant 0 : index
    %183 = vector.load %arg4[%c0_39, %c0_40] : memref<32x32xbf16, #tpu.memory_space<vmem>>, vector<32x32xbf16>
    %cst_41 = arith.constant dense<0.000000e+00> : vector<8x32xf32>
    %184 = tpu.matmul %182, %183, %cst_41 {dimension_numbers = #tpu.dot_dimension_numbers<[1], [0], [0], [1], [0, 0, 1, 1], [], []>} : vector<8x32xbf16>, vector<32x32xbf16>, vector<8x32xf32> -> vector<8x32xf32>
    %c0_42 = arith.constant 0 : index
    %c0_43 = arith.constant 0 : index
    %185 = vector.load %arg5[%c0_42, %c0_43] : memref<33x32xbf16, #tpu.memory_space<vmem>>, vector<33x32xbf16>
    %cst_44 = arith.constant dense<0.000000e+00> : vector<8x32xf32>
    %186 = tpu.matmul %0, %185, %cst_44 {dimension_numbers = #tpu.dot_dimension_numbers<[1], [0], [0], [1], [0, 0, 1, 1], [], []>} : vector<8x33xbf16>, vector<33x32xbf16>, vector<8x32xf32> -> vector<8x32xf32>
    %187 = arith.addf %184, %186 : vector<8x32xf32>
    %cst_45 = arith.constant 0.000000e+00 : f32
    %188 = vector.broadcast %cst_45 : f32 to vector<8x32xf32>
    %189 = arith.maximumf %187, %188 : vector<8x32xf32>
    %190 = arith.truncf %189 : vector<8x32xf32> to vector<8x32xbf16>
    %c0_46 = arith.constant 0 : index
    %c0_47 = arith.constant 0 : index
    %191 = vector.load %arg6[%c0_46, %c0_47] : memref<32x32xbf16, #tpu.memory_space<vmem>>, vector<32x32xbf16>
    %cst_48 = arith.constant dense<0.000000e+00> : vector<8x32xf32>
    %192 = tpu.matmul %190, %191, %cst_48 {dimension_numbers = #tpu.dot_dimension_numbers<[1], [0], [0], [1], [0, 0, 1, 1], [], []>} : vector<8x32xbf16>, vector<32x32xbf16>, vector<8x32xf32> -> vector<8x32xf32>
    %c0_49 = arith.constant 0 : index
    %c0_50 = arith.constant 0 : index
    %193 = vector.load %arg7[%c0_49, %c0_50] : memref<1x32xf32, #tpu.memory_space<vmem>>, vector<1x32xf32>
    %194 = vector.broadcast %193 : vector<1x32xf32> to vector<8x32xf32>
    %195 = arith.addf %192, %194 : vector<8x32xf32>
    %c0_51 = arith.constant 0 : index
    %c0_52 = arith.constant 0 : index
    %196 = vector.load %arg8[%c0_51, %c0_52] : memref<8x32xf32, #tpu.memory_space<vmem>>, vector<8x32xf32>
    tpu.vector_store %arg8[%c0_51, %c0_52], %195 {strides = array<i32>} : memref<8x32xf32, #tpu.memory_space<vmem>>, vector<8x32xf32>,
    return
  }
  func.func @transform_0(%arg0: i32) -> (i32, i32) {
    %c0_i32 = arith.constant 0 : i32
    %c0_i32_0 = arith.constant 0 : i32
    return %arg0, %c0_i32 : i32, i32
  }
  func.func @transform_1(%arg0: i32) -> (i32, i32) {
    %c0_i32 = arith.constant 0 : i32
    %c0_i32_0 = arith.constant 0 : i32
    %c0_i32_1 = arith.constant 0 : i32
    return %c0_i32, %c0_i32_0 : i32, i32
  }
  func.func @transform_2(%arg0: i32) -> (i32, i32) {
    %c0_i32 = arith.constant 0 : i32
    %c0_i32_0 = arith.constant 0 : i32
    %c0_i32_1 = arith.constant 0 : i32
    return %c0_i32, %c0_i32_0 : i32, i32
  }
  func.func @transform_3(%arg0: i32) -> (i32, i32) {
    %c0_i32 = arith.constant 0 : i32
    %c0_i32_0 = arith.constant 0 : i32
    %c0_i32_1 = arith.constant 0 : i32
    return %c0_i32, %c0_i32_0 : i32, i32
  }
  func.func @transform_4(%arg0: i32) -> (i32, i32) {
    %c0_i32 = arith.constant 0 : i32
    %c0_i32_0 = arith.constant 0 : i32
    %c0_i32_1 = arith.constant 0 : i32
    return %c0_i32, %c0_i32_0 : i32, i32
  }
  func.func @transform_5(%arg0: i32) -> (i32, i32) {
    %c0_i32 = arith.constant 0 : i32
    %c0_i32_0 = arith.constant 0 : i32
    %c0_i32_1 = arith.constant 0 : i32
    return %c0_i32, %c0_i32_0 : i32, i32
  }
  func.func @transform_6(%arg0: i32) -> (i32, i32) {
    %c0_i32 = arith.constant 0 : i32
    %c0_i32_0 = arith.constant 0 : i32
    %c0_i32_1 = arith.constant 0 : i32
    return %c0_i32, %c0_i32_0 : i32, i32
  }
  func.func @transform_7(%arg0: i32) -> (i32, i32) {
    %c0_i32 = arith.constant 0 : i32
    %c0_i32_0 = arith.constant 0 : i32
    return %arg0, %c0_i32 : i32, i32
  }
}

</mosaic_0001>

<llo_original>
// kernel: mylstm_forward.1
$region0: #{mylstm_forward.1}
  #allocation0 [shape = 'u32[]', space=smem, size = 0x4, offset = 0x4, fixed_abs, tag = 'smem constant byte address 0x4 - core index']
  #allocation1 [shape = 'u32[144,128]{1,0:T(1,128)}', space=vmem, size = 0x12000, scoped, tag = 'internal scratch']
  %s0 = inlined_call_operand.vmem [shape: bf16[8,33], index: 0, kind: input, shape index: {}]
  %s1 = inlined_call_operand.hbm [shape: bf16[33,1024], index: 1, kind: input, shape index: {}]
  %s2 = inlined_call_operand.vmem [shape: bf16[32,128], index: 2, kind: input, shape index: {}]
  %s3 = inlined_call_operand.vmem [shape: bf16[32,32], index: 3, kind: input, shape index: {}]
  %s4 = inlined_call_operand.vmem [shape: bf16[33,32], index: 4, kind: input, shape index: {}]
  %s5 = inlined_call_operand.hbm [shape: bf16[32,32], index: 5, kind: input, shape index: {}]
  %s6 = inlined_call_operand.vmem [shape: f32[1,32], index: 6, kind: input, shape index: {}]
  %s7 = inlined_call_operand.vmem [shape: f32[8,32], index: 7, kind: output, shape index: {}]
  %s8 = sld [smem:[#allocation0]]
  $region46: #{mylstm_forward.1} parent=0
    _
  %s10 = ssub.s32 1, %s8
  %s11 = scalar_select 0, %s10, %s8
  $region1: #{mylstm_forward.1} parent=0
    #allocation2 [shape = 'u8[81920]{0}', space=vmem, size = 0x14000, scoped, tag = 'input window, operand 1, single buffered']
    #allocation3 [shape = 's32[1]{0}', space=sflag, size = 0x4, scoped, tag = 'scoped memory for mylstm_forward.1']
    #allocation4 [shape = 'u8[8192]{0}', space=vmem, size = 0x2000, scoped, tag = 'input window, operand 5, single buffered']
    #allocation5 [shape = 's32[1]{0}', space=sflag, size = 0x4, scoped, tag = 'scoped memory for mylstm_forward.1']
    %12 = vsyncpa [#allocation3], 0
    %13 = vsyncpa [#allocation5], 0
    // Predicated region
    $region2: #{mylstm_forward.1} parent=1 // pred_check
      _
    $region3: #{mylstm_forward.1} parent=1 // pred_check_branch
      %15 = sbr.rel (0) target = $region5
    $region4: #{mylstm_forward.1} parent=1 // pred_region
      _
    $region5: #{mylstm_forward.1} parent=1 // pred_fallthru
      _
    // Predicated region
    $region6: #{mylstm_forward.1} parent=1 // pred_check
      _
    $region7: #{mylstm_forward.1} parent=1 // pred_check_branch
      %17 = sbr.rel (0) target = $region9
    $region8: #{mylstm_forward.1} parent=1 // pred_region
      %s19 = ssub.s32 2560, 2560
      %20 = vsyncadd [#allocation3], %s19
      %s21 = sshll.u32 [#allocation2], 4
      %s22 = int_to_ptr.vmem [resolvable:$true] %s21
      %27 = dma.hbm_to_vmem [thread:$0]  %s1, 2560, %s22, [#allocation3], 512, 512, 32
    $region9: #{mylstm_forward.1} parent=1 // pred_fallthru
      _
    // Predicated region
    $region10: #{mylstm_forward.1} parent=1 // pred_check
      _
    $region11: #{mylstm_forward.1} parent=1 // pred_check_branch
      %29 = sbr.rel (0) target = $region13
    $region12: #{mylstm_forward.1} parent=1 // pred_region
      _
    $region13: #{mylstm_forward.1} parent=1 // pred_fallthru
      _
    // Predicated region
    $region14: #{mylstm_forward.1} parent=1 // pred_check
      _
    $region15: #{mylstm_forward.1} parent=1 // pred_check_branch
      %31 = sbr.rel (0) target = $region17
    $region16: #{mylstm_forward.1} parent=1 // pred_region
      _
    $region17: #{mylstm_forward.1} parent=1 // pred_fallthru
      _
    // Predicated region
    $region18: #{mylstm_forward.1} parent=1 // pred_check
      _
    $region19: #{mylstm_forward.1} parent=1 // pred_check_branch
      %33 = sbr.rel (0) target = $region21
    $region20: #{mylstm_forward.1} parent=1 // pred_region
      _
    $region21: #{mylstm_forward.1} parent=1 // pred_fallthru
      _
    // Predicated region
    $region22: #{mylstm_forward.1} parent=1 // pred_check
      _
    $region23: #{mylstm_forward.1} parent=1 // pred_check_branch
      %35 = sbr.rel (0) target = $region25
    $region24: #{mylstm_forward.1} parent=1 // pred_region
      %s37 = ssub.s32 256, 256
      %38 = vsyncadd [#allocation5], %s37
      %s39 = sshll.u32 [#allocation4], 4
      %s40 = int_to_ptr.vmem [resolvable:$true] %s39
      %45 = dma.hbm_to_vmem [thread:$0]  %s5, 256, %s40, [#allocation5], 64, 64, 4
    $region25: #{mylstm_forward.1} parent=1 // pred_fallthru
      _
    // Predicated region
    $region26: #{mylstm_forward.1} parent=1 // pred_check
      _
    $region27: #{mylstm_forward.1} parent=1 // pred_check_branch
      %47 = sbr.rel (0) target = $region29
    $region28: #{mylstm_forward.1} parent=1 // pred_region
      _
    $region29: #{mylstm_forward.1} parent=1 // pred_fallthru
      _
    // Predicated region
    $region30: #{mylstm_forward.1} parent=1 // pred_check
      _
    $region31: #{mylstm_forward.1} parent=1 // pred_check_branch
      %49 = sbr.rel (0) target = $region33
    $region32: #{mylstm_forward.1} parent=1 // pred_region
      %50 = dma.done [#allocation3], 2560
    $region33: #{mylstm_forward.1} parent=1 // pred_fallthru
      _
    // Predicated region
    $region34: #{mylstm_forward.1} parent=1 // pred_check
      _
    $region35: #{mylstm_forward.1} parent=1 // pred_check_branch
      %52 = sbr.rel (0) target = $region37
    $region36: #{mylstm_forward.1} parent=1 // pred_region
      %53 = dma.done [#allocation5], 256
    $region37: #{mylstm_forward.1} parent=1 // pred_fallthru
      _
    %v55 = vld [vmem:[%s0] sm:$0xf]
    %v56 = vld [vmem:[#allocation2] sm:$0xff]
    %v57 = vld [vmem:[#allocation2 + $0x8] sm:$0xff]
    %v58 = vld [vmem:[#allocation2 + $0x10] sm:$0xff]
    %v59 = vld [vmem:[#allocation2 + $0x18] sm:$0xff]
    %v60 = vld [vmem:[#allocation2 + $0x20] sm:$0xff]
    %v61 = vld [vmem:[#allocation2 + $0x28] sm:$0xff]
    %v62 = vld [vmem:[#allocation2 + $0x30] sm:$0xff]
    %v63 = vld [vmem:[#allocation2 + $0x38] sm:$0xff]
    %v64 = vld [vmem:[#allocation2 + $0x40] sm:$0xff]
    %v65 = vld [vmem:[#allocation2 + $0x48] sm:$0xff]
    %v66 = vld [vmem:[#allocation2 + $0x50] sm:$0xff]
    %v67 = vld [vmem:[#allocation2 + $0x58] sm:$0xff]
    %v68 = vld [vmem:[#allocation2 + $0x60] sm:$0xff]
    %v69 = vld [vmem:[#allocation2 + $0x68] sm:$0xff]
    %v70 = vld [vmem:[#allocation2 + $0x70] sm:$0xff]
    %v71 = vld [vmem:[#allocation2 + $0x78] sm:$0xff]
    %v72 = vld [vmem:[#allocation2 + $0x80] sm:$0x11]
    %v73 = vld [vmem:[#allocation2 + $0x88] sm:$0x11]
    %v74 = vld [vmem:[#allocation2 + $0x90] sm:$0x11]
    %v75 = vld [vmem:[#allocation2 + $0x98] sm:$0x11]
    %v96 = vunpack.c.l.b16 %v56
    %v97 = vunpack.c.h.b16 %v56
    %v98 = vunpack.c.l.b16 %v57
    %v99 = vunpack.c.h.b16 %v57
    %v100 = vunpack.c.l.b16 %v58
    %v101 = vunpack.c.h.b16 %v58
    %v102 = vunpack.c.l.b16 %v59
    %v103 = vunpack.c.h.b16 %v59
    %v104 = vunpack.c.l.b16 %v60
    %v105 = vunpack.c.h.b16 %v60
    %v106 = vunpack.c.l.b16 %v61
    %v107 = vunpack.c.h.b16 %v61
    %v108 = vunpack.c.l.b16 %v62
    %v109 = vunpack.c.h.b16 %v62
    %v110 = vunpack.c.l.b16 %v63
    %v111 = vunpack.c.h.b16 %v63
    %v112 = vunpack.c.l.b16 %v64
    %v113 = vunpack.c.h.b16 %v64
    %v114 = vunpack.c.l.b16 %v65
    %v115 = vunpack.c.h.b16 %v65
    %v116 = vunpack.c.l.b16 %v66
    %v117 = vunpack.c.h.b16 %v66
    %v118 = vunpack.c.l.b16 %v67
    %v119 = vunpack.c.h.b16 %v67
    %v120 = vunpack.c.l.b16 %v68
    %v121 = vunpack.c.h.b16 %v68
    %v122 = vunpack.c.l.b16 %v69
    %v123 = vunpack.c.h.b16 %v69
    %v124 = vunpack.c.l.b16 %v70
    %v125 = vunpack.c.h.b16 %v70
    %v126 = vunpack.c.l.b16 %v71
    %v127 = vunpack.c.h.b16 %v71
    %v128 = vunpack.c.l.b16 %v72
    %v129 = vunpack.c.h.b16 %v72
    %v130 = vunpack.c.l.b16 %v73
    %v131 = vunpack.c.h.b16 %v73
    %v132 = vunpack.c.l.b16 %v74
    %v133 = vunpack.c.h.b16 %v74
    %v134 = vunpack.c.l.b16 %v75
    %v135 = vunpack.c.h.b16 %v75
    %v136 = vpack.c.b16 %v104, %v96
    %v137 = vpack.c.b16 %v105, %v97
    %v138 = vpack.c.b16 %v106, %v98
    %v139 = vpack.c.b16 %v107, %v99
    %v140 = vpack.c.b16 %v108, %v100
    %v141 = vpack.c.b16 %v109, %v101
    %v142 = vpack.c.b16 %v110, %v102
    %v143 = vpack.c.b16 %v111, %v103
    %v144 = vpack.c.b16 %v120, %v112
    %v145 = vpack.c.b16 %v121, %v113
    %v146 = vpack.c.b16 %v122, %v114
    %v147 = vpack.c.b16 %v123, %v115
    %v148 = vpack.c.b16 %v124, %v116
    %v149 = vpack.c.b16 %v125, %v117
    %v150 = vpack.c.b16 %v126, %v118
    %v151 = vpack.c.b16 %v127, %v119
    %v152 = vpack.c.b16 %v128, %v128
    %v153 = vpack.c.b16 %v129, %v129
    %v154 = vpack.c.b16 %v130, %v130
    %v155 = vpack.c.b16 %v131, %v131
    %v156 = vpack.c.b16 %v132, %v132
    %v157 = vpack.c.b16 %v133, %v133
    %v158 = vpack.c.b16 %v134, %v134
    %v159 = vpack.c.b16 %v135, %v135
    %vm176 = vcmask 269312
    %v178 = vsel %vm176, %v55, 0
    %vm180 = vcmask 1040384
    %v181 = vsel 0, 4294967295, 65535
    %v182 = vsel %vm180, %v181, 0
    %v184 = vand.u32 %v152, %v182
    %v187 = vand.u32 %v153, %v182
    %v190 = vand.u32 %v154, %v182
    %v193 = vand.u32 %v155, %v182
    %v196 = vand.u32 %v156, %v182
    %v199 = vand.u32 %v157, %v182
    %v202 = vand.u32 %v158, %v182
    %v205 = vand.u32 %v159, %v182
    %207 = vmatprep.subr.bf16.mxu0 %v137
    %208 = vmatpush1.bf16.msra.mxu0 %v136
    %209 = vmatprep.subr.bf16.mxu0 %v145
    %210 = vmatpush1.bf16.msra.mxu0 %v144
    %211 = vmatprep.subr.bf16.mxu0 %v187
    %212 = vmatpush1.bf16.msra.mxu0 %v184
    %213 = vmatprep.subr.bf16.mxu0 0
    %214 = vmatpush1.bf16.msra.mxu0 0
    %215 = vmatprep.subr.bf16.mxu0 0
    %216 = vmatpush1.bf16.msra.mxu0 0
    %217 = vmatprep.subr.bf16.mxu0 0
    %218 = vmatpush1.bf16.msra.mxu0 0
    %219 = vmatprep.subr.bf16.mxu0 0
    %220 = vmatpush1.bf16.msra.mxu0 0
    %221 = vmatprep.subr.bf16.mxu0 0
    %222 = vmatpush1.bf16.msra.mxu0 0
    %223 = vmatprep.subr.bf16.mxu0 0
    %224 = vmatpush1.bf16.msra.mxu0 0
    %225 = vmatprep.subr.bf16.mxu0 0
    %226 = vmatpush1.bf16.msra.mxu0 0
    %227 = vmatprep.subr.bf16.mxu0 0
    %228 = vmatpush1.bf16.msra.mxu0 0
    %229 = vmatprep.subr.bf16.mxu0 0
    %230 = vmatpush1.bf16.msra.mxu0 0
    %231 = vmatprep.subr.bf16.mxu0 0
    %232 = vmatpush1.bf16.msra.mxu0 0
    %233 = vmatprep.subr.bf16.mxu0 0
    %234 = vmatpush1.bf16.msra.mxu0 0
    %235 = vmatprep.subr.bf16.mxu0 0
    %236 = vmatpush1.bf16.msra.mxu0 0
    %237 = vmatprep.subr.bf16.mxu0 0
    %238 = vmatpush1.bf16.msra.mxu0 0
    %239 = vmatprep.mubr.bf16.mxu0 0
    %240 = vmatmul.mubr.bf16.gmra.mrb[0].mxu0 %v178
    %v241 = vpop.f32.mrb[0].mxu0
    %v242 = vadd.f32 0.0, %v241
    %v243 = vpop.f32.mrb[0].mxu0
    %v244 = vadd.f32 0.0, %v243
    %v245 = vpop.f32.mrb[0].mxu0
    %v246 = vpop.f32.mrb[0].mxu0
    %247 = vdwg.mxu0
    %248 = vmatprep.subr.bf16.mxu0 %v139
    %249 = vmatpush1.bf16.msra.mxu0 %v138
    %250 = vmatprep.subr.bf16.mxu0 %v147
    %251 = vmatpush1.bf16.msra.mxu0 %v146
    %252 = vmatprep.subr.bf16.mxu0 %v193
    %253 = vmatpush1.bf16.msra.mxu0 %v190
    %254 = vmatprep.subr.bf16.mxu0 0
    %255 = vmatpush1.bf16.msra.mxu0 0
    %256 = vmatprep.subr.bf16.mxu0 0
    %257 = vmatpush1.bf16.msra.mxu0 0
    %258 = vmatprep.subr.bf16.mxu0 0
    %259 = vmatpush1.bf16.msra.mxu0 0
    %260 = vmatprep.subr.bf16.mxu0 0
    %261 = vmatpush1.bf16.msra.mxu0 0
    %262 = vmatprep.subr.bf16.mxu0 0
    %263 = vmatpush1.bf16.msra.mxu0 0
    %264 = vmatprep.subr.bf16.mxu0 0
    %265 = vmatpush1.bf16.msra.mxu0 0
    %266 = vmatprep.subr.bf16.mxu0 0
    %267 = vmatpush1.bf16.msra.mxu0 0
    %268 = vmatprep.subr.bf16.mxu0 0
    %269 = vmatpush1.bf16.msra.mxu0 0
    %270 = vmatprep.subr.bf16.mxu0 0
    %271 = vmatpush1.bf16.msra.mxu0 0
    %272 = vmatprep.subr.bf16.mxu0 0
    %273 = vmatpush1.bf16.msra.mxu0 0
    %274 = vmatprep.subr.bf16.mxu0 0
    %275 = vmatpush1.bf16.msra.mxu0 0
    %276 = vmatprep.subr.bf16.mxu0 0
    %277 = vmatpush1.bf16.msra.mxu0 0
    %278 = vmatprep.subr.bf16.mxu0 0
    %279 = vmatpush1.bf16.msra.mxu0 0
    %280 = vmatprep.mubr.bf16.mxu0 0
    %281 = vmatmul.mubr.bf16.gmra.mrb[0].mxu0 %v178
    %v282 = vpop.f32.mrb[0].mxu0
    %v283 = vadd.f32 0.0, %v282
    %v284 = vpop.f32.mrb[0].mxu0
    %v285 = vadd.f32 0.0, %v284
    %v286 = vpop.f32.mrb[0].mxu0
    %v287 = vpop.f32.mrb[0].mxu0
    %288 = vdwg.mxu0
    %289 = vmatprep.subr.bf16.mxu0 %v141
    %290 = vmatpush1.bf16.msra.mxu0 %v140
    %291 = vmatprep.subr.bf16.mxu0 %v149
    %292 = vmatpush1.bf16.msra.mxu0 %v148
    %293 = vmatprep.subr.bf16.mxu0 %v199
    %294 = vmatpush1.bf16.msra.mxu0 %v196
    %295 = vmatprep.subr.bf16.mxu0 0
    %296 = vmatpush1.bf16.msra.mxu0 0
    %297 = vmatprep.subr.bf16.mxu0 0
    %298 = vmatpush1.bf16.msra.mxu0 0
    %299 = vmatprep.subr.bf16.mxu0 0
    %300 = vmatpush1.bf16.msra.mxu0 0
    %301 = vmatprep.subr.bf16.mxu0 0
    %302 = vmatpush1.bf16.msra.mxu0 0
    %303 = vmatprep.subr.bf16.mxu0 0
    %304 = vmatpush1.bf16.msra.mxu0 0
    %305 = vmatprep.subr.bf16.mxu0 0
    %306 = vmatpush1.bf16.msra.mxu0 0
    %307 = vmatprep.subr.bf16.mxu0 0
    %308 = vmatpush1.bf16.msra.mxu0 0
    %309 = vmatprep.subr.bf16.mxu0 0
    %310 = vmatpush1.bf16.msra.mxu0 0
    %311 = vmatprep.subr.bf16.mxu0 0
    %312 = vmatpush1.bf16.msra.mxu0 0
    %313 = vmatprep.subr.bf16.mxu0 0
    %314 = vmatpush1.bf16.msra.mxu0 0
    %315 = vmatprep.subr.bf16.mxu0 0
    %316 = vmatpush1.bf16.msra.mxu0 0
    %317 = vmatprep.subr.bf16.mxu0 0
    %318 = vmatpush1.bf16.msra.mxu0 0
    %319 = vmatprep.subr.bf16.mxu0 0
    %320 = vmatpush1.bf16.msra.mxu0 0
    %321 = vmatprep.mubr.bf16.mxu0 0
    %322 = vmatmul.mubr.bf16.gmra.mrb[0].mxu0 %v178
    %v323 = vpop.f32.mrb[0].mxu0
    %v324 = vadd.f32 0.0, %v323
    %v325 = vpop.f32.mrb[0].mxu0
    %v326 = vadd.f32 0.0, %v325
    %v327 = vpop.f32.mrb[0].mxu0
    %v328 = vpop.f32.mrb[0].mxu0
    %329 = vdwg.mxu0
    %330 = vmatprep.subr.bf16.mxu0 %v143
    %331 = vmatpush1.bf16.msra.mxu0 %v142
    %332 = vmatprep.subr.bf16.mxu0 %v151
    %333 = vmatpush1.bf16.msra.mxu0 %v150
    %334 = vmatprep.subr.bf16.mxu0 %v205
    %335 = vmatpush1.bf16.msra.mxu0 %v202
    %336 = vmatprep.subr.bf16.mxu0 0
    %337 = vmatpush1.bf16.msra.mxu0 0
    %338 = vmatprep.subr.bf16.mxu0 0
    %339 = vmatpush1.bf16.msra.mxu0 0
    %340 = vmatprep.subr.bf16.mxu0 0
    %341 = vmatpush1.bf16.msra.mxu0 0
    %342 = vmatprep.subr.bf16.mxu0 0
    %343 = vmatpush1.bf16.msra.mxu0 0
    %344 = vmatprep.subr.bf16.mxu0 0
    %345 = vmatpush1.bf16.msra.mxu0 0
    %346 = vmatprep.subr.bf16.mxu0 0
    %347 = vmatpush1.bf16.msra.mxu0 0
    %348 = vmatprep.subr.bf16.mxu0 0
    %349 = vmatpush1.bf16.msra.mxu0 0
    %350 = vmatprep.subr.bf16.mxu0 0
    %351 = vmatpush1.bf16.msra.mxu0 0
    %352 = vmatprep.subr.bf16.mxu0 0
    %353 = vmatpush1.bf16.msra.mxu0 0
    %354 = vmatprep.subr.bf16.mxu0 0
    %355 = vmatpush1.bf16.msra.mxu0 0
    %356 = vmatprep.subr.bf16.mxu0 0
    %357 = vmatpush1.bf16.msra.mxu0 0
    %358 = vmatprep.subr.bf16.mxu0 0
    %359 = vmatpush1.bf16.msra.mxu0 0
    %360 = vmatprep.subr.bf16.mxu0 0
    %361 = vmatpush1.bf16.msra.mxu0 0
    %362 = vmatprep.mubr.bf16.mxu0 0
    %363 = vmatmul.mubr.bf16.gmra.mrb[0].mxu0 %v178
    %v364 = vpop.f32.mrb[0].mxu0
    %v365 = vadd.f32 0.0, %v364
    %v366 = vpop.f32.mrb[0].mxu0
    %v367 = vadd.f32 0.0, %v366
    %v368 = vpop.f32.mrb[0].mxu0
    %v369 = vpop.f32.mrb[0].mxu0
    %370 = vdwg.mxu0
    %v371 = vld [vmem:[%s2] sm:$0xf]
    %v372 = vld [vmem:[%s2 + $0x4] sm:$0xf]
    %v373 = vld [vmem:[%s2 + $0x8] sm:$0xf]
    %v374 = vld [vmem:[%s2 + $0xc] sm:$0xf]
    %v379 = vunpack.c.l.b16 %v371
    %v380 = vunpack.c.l.b16 %v372
    %v381 = vunpack.c.l.b16 %v373
    %v382 = vunpack.c.l.b16 %v374
    %v383 = vpack.c.b16 %v380, %v379
    %v384 = vpack.c.b16 %v382, %v381
    %vm387 = vcmask 261120
    %v389 = vsel %vm387, 0, 0
    %391 = vmatprep.subr.bf16.mxu0 0
    %392 = vmatpush1.bf16.msra.mxu0 %v383
    %393 = vmatprep.subr.bf16.mxu0 0
    %394 = vmatpush1.bf16.msra.mxu0 %v384
    %395 = vmatprep.subr.bf16.mxu0 0
    %396 = vmatpush1.bf16.msra.mxu0 0
    %397 = vmatprep.subr.bf16.mxu0 0
    %398 = vmatpush1.bf16.msra.mxu0 0
    %399 = vmatprep.subr.bf16.mxu0 0
    %400 = vmatpush1.bf16.msra.mxu0 0
    %401 = vmatprep.subr.bf16.mxu0 0
    %402 = vmatpush1.bf16.msra.mxu0 0
    %403 = vmatprep.subr.bf16.mxu0 0
    %404 = vmatpush1.bf16.msra.mxu0 0
    %405 = vmatprep.subr.bf16.mxu0 0
    %406 = vmatpush1.bf16.msra.mxu0 0
    %407 = vmatprep.subr.bf16.mxu0 0
    %408 = vmatpush1.bf16.msra.mxu0 0
    %409 = vmatprep.subr.bf16.mxu0 0
    %410 = vmatpush1.bf16.msra.mxu0 0
    %411 = vmatprep.subr.bf16.mxu0 0
    %412 = vmatpush1.bf16.msra.mxu0 0
    %413 = vmatprep.subr.bf16.mxu0 0
    %414 = vmatpush1.bf16.msra.mxu0 0
    %415 = vmatprep.subr.bf16.mxu0 0
    %416 = vmatpush1.bf16.msra.mxu0 0
    %417 = vmatprep.subr.bf16.mxu0 0
    %418 = vmatpush1.bf16.msra.mxu0 0
    %419 = vmatprep.subr.bf16.mxu0 0
    %420 = vmatpush1.bf16.msra.mxu0 0
    %421 = vmatprep.subr.bf16.mxu0 0
    %422 = vmatpush1.bf16.msra.mxu0 0
    %423 = vmatprep.mubr.bf16.mxu0 0
    %424 = vmatmul.mubr.bf16.gmra.mrb[0].mxu0 %v389
    %v425 = vpop.f32.mrb[0].mxu0
    %v426 = vadd.f32 0.0, %v425
    %v427 = vpop.f32.mrb[0].mxu0
    %v428 = vpop.f32.mrb[0].mxu0
    %v429 = vpop.f32.mrb[0].mxu0
    %430 = vdwg.mxu0
    %v431 = vadd.f32 %v242, %v426
    %v432 = vxor.u32 %v431, 2147483648
    %v433 = vmul.f32 %v432, 1.442695
    %v434 = vpow.pop %v433
    %v435 = vadd.f32 %v434, 1.0
    %v436 = vrcp.pop %v435
    %v437 = vmul.f32 1.0, %v436
    %v438 = vmul.f32 %v437, 2.0
    %v439 = vsub.f32 %v438, 1.0
    %v440 = vmul.f32 %v437, 0.0
    %442 = vrot.lane.b32.xlu0 %v439, 64
    %v443 = vpop.permute.xlu0 %442
    %v445 = vmul.f32 %v437, %v443
    %447 = vrot.lane.b32.xlu0 %v445, 32
    %v448 = vpop.permute.xlu0 %447
    %v450 = vadd.f32 %v440, %v448
    %v451 = vtanh.pop %v450
    %453 = vrot.lane.b32.xlu0 %v451, 64
    %v454 = vpop.permute.xlu0 %453
    %v456 = vmul.f32 %v437, %v454
    %v457 = vpack.c.bf16 %v456, %v456
    %459 = vrot.lane.b32.xlu0 %v457, 32
    %v460 = vpop.permute.xlu0 %459
    %v462 = vsel %vm387, %v460, 0
    %464 = vmatprep.subr.bf16.mxu0 0
    %465 = vmatpush1.bf16.msra.mxu0 %v383
    %466 = vmatprep.subr.bf16.mxu0 0
    %467 = vmatpush1.bf16.msra.mxu0 %v384
    %468 = vmatprep.subr.bf16.mxu0 0
    %469 = vmatpush1.bf16.msra.mxu0 0
    %470 = vmatprep.subr.bf16.mxu0 0
    %471 = vmatpush1.bf16.msra.mxu0 0
    %472 = vmatprep.subr.bf16.mxu0 0
    %473 = vmatpush1.bf16.msra.mxu0 0
    %474 = vmatprep.subr.bf16.mxu0 0
    %475 = vmatpush1.bf16.msra.mxu0 0
    %476 = vmatprep.subr.bf16.mxu0 0
    %477 = vmatpush1.bf16.msra.mxu0 0
    %478 = vmatprep.subr.bf16.mxu0 0
    %479 = vmatpush1.bf16.msra.mxu0 0
    %480 = vmatprep.subr.bf16.mxu0 0
    %481 = vmatpush1.bf16.msra.mxu0 0
    %482 = vmatprep.subr.bf16.mxu0 0
    %483 = vmatpush1.bf16.msra.mxu0 0
    %484 = vmatprep.subr.bf16.mxu0 0
    %485 = vmatpush1.bf16.msra.mxu0 0
    %486 = vmatprep.subr.bf16.mxu0 0
    %487 = vmatpush1.bf16.msra.mxu0 0
    %488 = vmatprep.subr.bf16.mxu0 0
    %489 = vmatpush1.bf16.msra.mxu0 0
    %490 = vmatprep.subr.bf16.mxu0 0
    %491 = vmatpush1.bf16.msra.mxu0 0
    %492 = vmatprep.subr.bf16.mxu0 0
    %493 = vmatpush1.bf16.msra.mxu0 0
    %494 = vmatprep.subr.bf16.mxu0 0
    %495 = vmatpush1.bf16.msra.mxu0 0
    %496 = vmatprep.mubr.bf16.mxu0 0
    %497 = vmatmul.mubr.bf16.gmra.mrb[0].mxu0 %v462
    %v498 = vpop.f32.mrb[0].mxu0
    %v499 = vadd.f32 0.0, %v498
    %v500 = vpop.f32.mrb[0].mxu0
    %v501 = vpop.f32.mrb[0].mxu0
    %v502 = vpop.f32.mrb[0].mxu0
    %503 = vdwg.mxu0
    %v504 = vadd.f32 %v244, %v499
    %v505 = vxor.u32 %v504, 2147483648
    %v506 = vmul.f32 %v505, 1.442695
    %v507 = vpow.pop %v506
    %v508 = vadd.f32 %v507, 1.0
    %v509 = vrcp.pop %v508
    %v510 = vmul.f32 1.0, %v509
    %v511 = vmul.f32 %v510, 2.0
    %v512 = vsub.f32 %v511, 1.0
    %v513 = vmul.f32 %v510, %v450
    %515 = vrot.lane.b32.xlu0 %v512, 64
    %v516 = vpop.permute.xlu0 %515
    %v518 = vmul.f32 %v510, %v516
    %520 = vrot.lane.b32.xlu0 %v518, 32
    %v521 = vpop.permute.xlu0 %520
    %v523 = vadd.f32 %v513, %v521
    %v524 = vtanh.pop %v523
    %526 = vrot.lane.b32.xlu0 %v524, 64
    %v527 = vpop.permute.xlu0 %526
    %v529 = vmul.f32 %v510, %v527
    %v530 = vpack.c.bf16 %v529, %v529
    %532 = vrot.lane.b32.xlu0 %v530, 32
    %v533 = vpop.permute.xlu0 %532
    %v535 = vsel %vm387, %v533, 0
    %537 = vmatprep.subr.bf16.mxu0 0
    %538 = vmatpush1.bf16.msra.mxu0 %v383
    %539 = vmatprep.subr.bf16.mxu0 0
    %540 = vmatpush1.bf16.msra.mxu0 %v384
    %541 = vmatprep.subr.bf16.mxu0 0
    %542 = vmatpush1.bf16.msra.mxu0 0
    %543 = vmatprep.subr.bf16.mxu0 0
    %544 = vmatpush1.bf16.msra.mxu0 0
    %545 = vmatprep.subr.bf16.mxu0 0
    %546 = vmatpush1.bf16.msra.mxu0 0
    %547 = vmatprep.subr.bf16.mxu0 0
    %548 = vmatpush1.bf16.msra.mxu0 0
    %549 = vmatprep.subr.bf16.mxu0 0
    %550 = vmatpush1.bf16.msra.mxu0 0
    %551 = vmatprep.subr.bf16.mxu0 0
    %552 = vmatpush1.bf16.msra.mxu0 0
    %553 = vmatprep.subr.bf16.mxu0 0
    %554 = vmatpush1.bf16.msra.mxu0 0
    %555 = vmatprep.subr.bf16.mxu0 0
    %556 = vmatpush1.bf16.msra.mxu0 0
    %557 = vmatprep.subr.bf16.mxu0 0
    %558 = vmatpush1.bf16.msra.mxu0 0
    %559 = vmatprep.subr.bf16.mxu0 0
    %560 = vmatpush1.bf16.msra.mxu0 0
    %561 = vmatprep.subr.bf16.mxu0 0
    %562 = vmatpush1.bf16.msra.mxu0 0
    %563 = vmatprep.subr.bf16.mxu0 0
    %564 = vmatpush1.bf16.msra.mxu0 0
    %565 = vmatprep.subr.bf16.mxu0 0
    %566 = vmatpush1.bf16.msra.mxu0 0
    %567 = vmatprep.subr.bf16.mxu0 0
    %568 = vmatpush1.bf16.msra.mxu0 0
    %569 = vmatprep.mubr.bf16.mxu0 0
    %570 = vmatmul.mubr.bf16.gmra.mrb[0].mxu0 %v535
    %v571 = vpop.f32.mrb[0].mxu0
    %v572 = vadd.f32 0.0, %v571
    %v573 = vpop.f32.mrb[0].mxu0
    %v574 = vpop.f32.mrb[0].mxu0
    %v575 = vpop.f32.mrb[0].mxu0
    %576 = vdwg.mxu0
    %v577 = vadd.f32 %v283, %v572
    %v578 = vxor.u32 %v577, 2147483648
    %v579 = vmul.f32 %v578, 1.442695
    %v580 = vpow.pop %v579
    %v581 = vadd.f32 %v580, 1.0
    %v582 = vrcp.pop %v581
    %v583 = vmul.f32 1.0, %v582
    %v584 = vmul.f32 %v583, 2.0
    %v585 = vsub.f32 %v584, 1.0
    %v586 = vmul.f32 %v583, %v523
    %588 = vrot.lane.b32.xlu0 %v585, 64
    %v589 = vpop.permute.xlu0 %588
    %v591 = vmul.f32 %v583, %v589
    %593 = vrot.lane.b32.xlu0 %v591, 32
    %v594 = vpop.permute.xlu0 %593
    %v596 = vadd.f32 %v586, %v594
    %v597 = vtanh.pop %v596
    %599 = vrot.lane.b32.xlu0 %v597, 64
    %v600 = vpop.permute.xlu0 %599
    %v602 = vmul.f32 %v583, %v600
    %v603 = vpack.c.bf16 %v602, %v602
    %605 = vrot.lane.b32.xlu0 %v603, 32
    %v606 = vpop.permute.xlu0 %605
    %v608 = vsel %vm387, %v606, 0
    %610 = vmatprep.subr.bf16.mxu0 0
    %611 = vmatpush1.bf16.msra.mxu0 %v383
    %612 = vmatprep.subr.bf16.mxu0 0
    %613 = vmatpush1.bf16.msra.mxu0 %v384
    %614 = vmatprep.subr.bf16.mxu0 0
    %615 = vmatpush1.bf16.msra.mxu0 0
    %616 = vmatprep.subr.bf16.mxu0 0
    %617 = vmatpush1.bf16.msra.mxu0 0
    %618 = vmatprep.subr.bf16.mxu0 0
    %619 = vmatpush1.bf16.msra.mxu0 0
    %620 = vmatprep.subr.bf16.mxu0 0
    %621 = vmatpush1.bf16.msra.mxu0 0
    %622 = vmatprep.subr.bf16.mxu0 0
    %623 = vmatpush1.bf16.msra.mxu0 0
    %624 = vmatprep.subr.bf16.mxu0 0
    %625 = vmatpush1.bf16.msra.mxu0 0
    %626 = vmatprep.subr.bf16.mxu0 0
    %627 = vmatpush1.bf16.msra.mxu0 0
    %628 = vmatprep.subr.bf16.mxu0 0
    %629 = vmatpush1.bf16.msra.mxu0 0
    %630 = vmatprep.subr.bf16.mxu0 0
    %631 = vmatpush1.bf16.msra.mxu0 0
    %632 = vmatprep.subr.bf16.mxu0 0
    %633 = vmatpush1.bf16.msra.mxu0 0
    %634 = vmatprep.subr.bf16.mxu0 0
    %635 = vmatpush1.bf16.msra.mxu0 0
    %636 = vmatprep.subr.bf16.mxu0 0
    %637 = vmatpush1.bf16.msra.mxu0 0
    %638 = vmatprep.subr.bf16.mxu0 0
    %639 = vmatpush1.bf16.msra.mxu0 0
    %640 = vmatprep.subr.bf16.mxu0 0
    %641 = vmatpush1.bf16.msra.mxu0 0
    %642 = vmatprep.mubr.bf16.mxu0 0
    %643 = vmatmul.mubr.bf16.gmra.mrb[0].mxu0 %v608
    %v644 = vpop.f32.mrb[0].mxu0
    %v645 = vadd.f32 0.0, %v644
    %v646 = vpop.f32.mrb[0].mxu0
    %v647 = vpop.f32.mrb[0].mxu0
    %v648 = vpop.f32.mrb[0].mxu0
    %649 = vdwg.mxu0
    %v650 = vadd.f32 %v285, %v645
    %v651 = vxor.u32 %v650, 2147483648
    %v652 = vmul.f32 %v651, 1.442695
    %v653 = vpow.pop %v652
    %v654 = vadd.f32 %v653, 1.0
    %v655 = vrcp.pop %v654
    %v656 = vmul.f32 1.0, %v655
    %v657 = vmul.f32 %v656, 2.0
    %v658 = vsub.f32 %v657, 1.0
    %v659 = vmul.f32 %v656, %v596
    %661 = vrot.lane.b32.xlu0 %v658, 64
    %v662 = vpop.permute.xlu0 %661
    %v664 = vmul.f32 %v656, %v662
    %666 = vrot.lane.b32.xlu0 %v664, 32
    %v667 = vpop.permute.xlu0 %666
    %v669 = vadd.f32 %v659, %v667
    %v670 = vtanh.pop %v669
    %672 = vrot.lane.b32.xlu0 %v670, 64
    %v673 = vpop.permute.xlu0 %672
    %v675 = vmul.f32 %v656, %v673
    %v676 = vpack.c.bf16 %v675, %v675
    %678 = vrot.lane.b32.xlu0 %v676, 32
    %v679 = vpop.permute.xlu0 %678
    %v681 = vsel %vm387, %v679, 0
    %683 = vmatprep.subr.bf16.mxu0 0
    %684 = vmatpush1.bf16.msra.mxu0 %v383
    %685 = vmatprep.subr.bf16.mxu0 0
    %686 = vmatpush1.bf16.msra.mxu0 %v384
    %687 = vmatprep.subr.bf16.mxu0 0
    %688 = vmatpush1.bf16.msra.mxu0 0
    %689 = vmatprep.subr.bf16.mxu0 0
    %690 = vmatpush1.bf16.msra.mxu0 0
    %691 = vmatprep.subr.bf16.mxu0 0
    %692 = vmatpush1.bf16.msra.mxu0 0
    %693 = vmatprep.subr.bf16.mxu0 0
    %694 = vmatpush1.bf16.msra.mxu0 0
    %695 = vmatprep.subr.bf16.mxu0 0
    %696 = vmatpush1.bf16.msra.mxu0 0
    %697 = vmatprep.subr.bf16.mxu0 0
    %698 = vmatpush1.bf16.msra.mxu0 0
    %699 = vmatprep.subr.bf16.mxu0 0
    %700 = vmatpush1.bf16.msra.mxu0 0
    %701 = vmatprep.subr.bf16.mxu0 0
    %702 = vmatpush1.bf16.msra.mxu0 0
    %703 = vmatprep.subr.bf16.mxu0 0
    %704 = vmatpush1.bf16.msra.mxu0 0
    %705 = vmatprep.subr.bf16.mxu0 0
    %706 = vmatpush1.bf16.msra.mxu0 0
    %707 = vmatprep.subr.bf16.mxu0 0
    %708 = vmatpush1.bf16.msra.mxu0 0
    %709 = vmatprep.subr.bf16.mxu0 0
    %710 = vmatpush1.bf16.msra.mxu0 0
    %711 = vmatprep.subr.bf16.mxu0 0
    %712 = vmatpush1.bf16.msra.mxu0 0
    %713 = vmatprep.subr.bf16.mxu0 0
    %714 = vmatpush1.bf16.msra.mxu0 0
    %715 = vmatprep.mubr.bf16.mxu0 0
    %716 = vmatmul.mubr.bf16.gmra.mrb[0].mxu0 %v681
    %v717 = vpop.f32.mrb[0].mxu0
    %v718 = vadd.f32 0.0, %v717
    %v719 = vpop.f32.mrb[0].mxu0
    %v720 = vpop.f32.mrb[0].mxu0
    %v721 = vpop.f32.mrb[0].mxu0
    %722 = vdwg.mxu0
    %v723 = vadd.f32 %v324, %v718
    %v724 = vxor.u32 %v723, 2147483648
    %v725 = vmul.f32 %v724, 1.442695
    %v726 = vpow.pop %v725
    %v727 = vadd.f32 %v726, 1.0
    %v728 = vrcp.pop %v727
    %v729 = vmul.f32 1.0, %v728
    %v730 = vmul.f32 %v729, 2.0
    %v731 = vsub.f32 %v730, 1.0
    %v732 = vmul.f32 %v729, %v669
    %734 = vrot.lane.b32.xlu0 %v731, 64
    %v735 = vpop.permute.xlu0 %734
    %v737 = vmul.f32 %v729, %v735
    %739 = vrot.lane.b32.xlu0 %v737, 32
    %v740 = vpop.permute.xlu0 %739
    %v742 = vadd.f32 %v732, %v740
    %v743 = vtanh.pop %v742
    %745 = vrot.lane.b32.xlu0 %v743, 64
    %v746 = vpop.permute.xlu0 %745
    %v748 = vmul.f32 %v729, %v746
    %v749 = vpack.c.bf16 %v748, %v748
    %751 = vrot.lane.b32.xlu0 %v749, 32
    %v752 = vpop.permute.xlu0 %751
    %v754 = vsel %vm387, %v752, 0
    %756 = vmatprep.subr.bf16.mxu0 0
    %757 = vmatpush1.bf16.msra.mxu0 %v383
    %758 = vmatprep.subr.bf16.mxu0 0
    %759 = vmatpush1.bf16.msra.mxu0 %v384
    %760 = vmatprep.subr.bf16.mxu0 0
    %761 = vmatpush1.bf16.msra.mxu0 0
    %762 = vmatprep.subr.bf16.mxu0 0
    %763 = vmatpush1.bf16.msra.mxu0 0
    %764 = vmatprep.subr.bf16.mxu0 0
    %765 = vmatpush1.bf16.msra.mxu0 0
    %766 = vmatprep.subr.bf16.mxu0 0
    %767 = vmatpush1.bf16.msra.mxu0 0
    %768 = vmatprep.subr.bf16.mxu0 0
    %769 = vmatpush1.bf16.msra.mxu0 0
    %770 = vmatprep.subr.bf16.mxu0 0
    %771 = vmatpush1.bf16.msra.mxu0 0
    %772 = vmatprep.subr.bf16.mxu0 0
    %773 = vmatpush1.bf16.msra.mxu0 0
    %774 = vmatprep.subr.bf16.mxu0 0
    %775 = vmatpush1.bf16.msra.mxu0 0
    %776 = vmatprep.subr.bf16.mxu0 0
    %777 = vmatpush1.bf16.msra.mxu0 0
    %778 = vmatprep.subr.bf16.mxu0 0
    %779 = vmatpush1.bf16.msra.mxu0 0
    %780 = vmatprep.subr.bf16.mxu0 0
    %781 = vmatpush1.bf16.msra.mxu0 0
    %782 = vmatprep.subr.bf16.mxu0 0
    %783 = vmatpush1.bf16.msra.mxu0 0
    %784 = vmatprep.subr.bf16.mxu0 0
    %785 = vmatpush1.bf16.msra.mxu0 0
    %786 = vmatprep.subr.bf16.mxu0 0
    %787 = vmatpush1.bf16.msra.mxu0 0
    %788 = vmatprep.mubr.bf16.mxu0 0
    %789 = vmatmul.mubr.bf16.gmra.mrb[0].mxu0 %v754
    %v790 = vpop.f32.mrb[0].mxu0
    %v791 = vadd.f32 0.0, %v790
    %v792 = vpop.f32.mrb[0].mxu0
    %v793 = vpop.f32.mrb[0].mxu0
    %v794 = vpop.f32.mrb[0].mxu0
    %795 = vdwg.mxu0
    %v796 = vadd.f32 %v326, %v791
    %v797 = vxor.u32 %v796, 2147483648
    %v798 = vmul.f32 %v797, 1.442695
    %v799 = vpow.pop %v798
    %v800 = vadd.f32 %v799, 1.0
    %v801 = vrcp.pop %v800
    %v802 = vmul.f32 1.0, %v801
    %v803 = vmul.f32 %v802, 2.0
    %v804 = vsub.f32 %v803, 1.0
    %v805 = vmul.f32 %v802, %v742
    %807 = vrot.lane.b32.xlu0 %v804, 64
    %v808 = vpop.permute.xlu0 %807
    %v810 = vmul.f32 %v802, %v808
    %812 = vrot.lane.b32.xlu0 %v810, 32
    %v813 = vpop.permute.xlu0 %812
    %v815 = vadd.f32 %v805, %v813
    %v816 = vtanh.pop %v815
    %818 = vrot.lane.b32.xlu0 %v816, 64
    %v819 = vpop.permute.xlu0 %818
    %v821 = vmul.f32 %v802, %v819
    %v822 = vpack.c.bf16 %v821, %v821
    %824 = vrot.lane.b32.xlu0 %v822, 32
    %v825 = vpop.permute.xlu0 %824
    %v827 = vsel %vm387, %v825, 0
    %829 = vmatprep.subr.bf16.mxu0 0
    %830 = vmatpush1.bf16.msra.mxu0 %v383
    %831 = vmatprep.subr.bf16.mxu0 0
    %832 = vmatpush1.bf16.msra.mxu0 %v384
    %833 = vmatprep.subr.bf16.mxu0 0
    %834 = vmatpush1.bf16.msra.mxu0 0
    %835 = vmatprep.subr.bf16.mxu0 0
    %836 = vmatpush1.bf16.msra.mxu0 0
    %837 = vmatprep.subr.bf16.mxu0 0
    %838 = vmatpush1.bf16.msra.mxu0 0
    %839 = vmatprep.subr.bf16.mxu0 0
    %840 = vmatpush1.bf16.msra.mxu0 0
    %841 = vmatprep.subr.bf16.mxu0 0
    %842 = vmatpush1.bf16.msra.mxu0 0
    %843 = vmatprep.subr.bf16.mxu0 0
    %844 = vmatpush1.bf16.msra.mxu0 0
    %845 = vmatprep.subr.bf16.mxu0 0
    %846 = vmatpush1.bf16.msra.mxu0 0
    %847 = vmatprep.subr.bf16.mxu0 0
    %848 = vmatpush1.bf16.msra.mxu0 0
    %849 = vmatprep.subr.bf16.mxu0 0
    %850 = vmatpush1.bf16.msra.mxu0 0
    %851 = vmatprep.subr.bf16.mxu0 0
    %852 = vmatpush1.bf16.msra.mxu0 0
    %853 = vmatprep.subr.bf16.mxu0 0
    %854 = vmatpush1.bf16.msra.mxu0 0
    %855 = vmatprep.subr.bf16.mxu0 0
    %856 = vmatpush1.bf16.msra.mxu0 0
    %857 = vmatprep.subr.bf16.mxu0 0
    %858 = vmatpush1.bf16.msra.mxu0 0
    %859 = vmatprep.subr.bf16.mxu0 0
    %860 = vmatpush1.bf16.msra.mxu0 0
    %861 = vmatprep.mubr.bf16.mxu0 0
    %862 = vmatmul.mubr.bf16.gmra.mrb[0].mxu0 %v827
    %v863 = vpop.f32.mrb[0].mxu0
    %v864 = vadd.f32 0.0, %v863
    %v865 = vpop.f32.mrb[0].mxu0
    %v866 = vpop.f32.mrb[0].mxu0
    %v867 = vpop.f32.mrb[0].mxu0
    %868 = vdwg.mxu0
    %v869 = vadd.f32 %v365, %v864
    %v870 = vxor.u32 %v869, 2147483648
    %v871 = vmul.f32 %v870, 1.442695
    %v872 = vpow.pop %v871
    %v873 = vadd.f32 %v872, 1.0
    %v874 = vrcp.pop %v873
    %v875 = vmul.f32 1.0, %v874
    %v876 = vmul.f32 %v875, 2.0
    %v877 = vsub.f32 %v876, 1.0
    %v878 = vmul.f32 %v875, %v815
    %880 = vrot.lane.b32.xlu0 %v877, 64
    %v881 = vpop.permute.xlu0 %880
    %v883 = vmul.f32 %v875, %v881
    %885 = vrot.lane.b32.xlu0 %v883, 32
    %v886 = vpop.permute.xlu0 %885
    %v888 = vadd.f32 %v878, %v886
    %v889 = vtanh.pop %v888
    %891 = vrot.lane.b32.xlu0 %v889, 64
    %v892 = vpop.permute.xlu0 %891
    %v894 = vmul.f32 %v875, %v892
    %v895 = vpack.c.bf16 %v894, %v894
    %897 = vrot.lane.b32.xlu0 %v895, 32
    %v898 = vpop.permute.xlu0 %897
    %v900 = vsel %vm387, %v898, 0
    %902 = vmatprep.subr.bf16.mxu0 0
    %903 = vmatpush1.bf16.msra.mxu0 %v383
    %904 = vmatprep.subr.bf16.mxu0 0
    %905 = vmatpush1.bf16.msra.mxu0 %v384
    %906 = vmatprep.subr.bf16.mxu0 0
    %907 = vmatpush1.bf16.msra.mxu0 0
    %908 = vmatprep.subr.bf16.mxu0 0
    %909 = vmatpush1.bf16.msra.mxu0 0
    %910 = vmatprep.subr.bf16.mxu0 0
    %911 = vmatpush1.bf16.msra.mxu0 0
    %912 = vmatprep.subr.bf16.mxu0 0
    %913 = vmatpush1.bf16.msra.mxu0 0
    %914 = vmatprep.subr.bf16.mxu0 0
    %915 = vmatpush1.bf16.msra.mxu0 0
    %916 = vmatprep.subr.bf16.mxu0 0
    %917 = vmatpush1.bf16.msra.mxu0 0
    %918 = vmatprep.subr.bf16.mxu0 0
    %919 = vmatpush1.bf16.msra.mxu0 0
    %920 = vmatprep.subr.bf16.mxu0 0
    %921 = vmatpush1.bf16.msra.mxu0 0
    %922 = vmatprep.subr.bf16.mxu0 0
    %923 = vmatpush1.bf16.msra.mxu0 0
    %924 = vmatprep.subr.bf16.mxu0 0
    %925 = vmatpush1.bf16.msra.mxu0 0
    %926 = vmatprep.subr.bf16.mxu0 0
    %927 = vmatpush1.bf16.msra.mxu0 0
    %928 = vmatprep.subr.bf16.mxu0 0
    %929 = vmatpush1.bf16.msra.mxu0 0
    %930 = vmatprep.subr.bf16.mxu0 0
    %931 = vmatpush1.bf16.msra.mxu0 0
    %932 = vmatprep.subr.bf16.mxu0 0
    %933 = vmatpush1.bf16.msra.mxu0 0
    %934 = vmatprep.mubr.bf16.mxu0 0
    %935 = vmatmul.mubr.bf16.gmra.mrb[0].mxu0 %v900
    %v936 = vpop.f32.mrb[0].mxu0
    %v937 = vadd.f32 0.0, %v936
    %v938 = vpop.f32.mrb[0].mxu0
    %v939 = vpop.f32.mrb[0].mxu0
    %v940 = vpop.f32.mrb[0].mxu0
    %941 = vdwg.mxu0
    %v942 = vadd.f32 %v367, %v937
    %v943 = vxor.u32 %v942, 2147483648
    %v944 = vmul.f32 %v943, 1.442695
    %v945 = vpow.pop %v944
    %v946 = vadd.f32 %v945, 1.0
    %v947 = vrcp.pop %v946
    %v948 = vmul.f32 1.0, %v947
    %v949 = vmul.f32 %v948, 2.0
    %v950 = vsub.f32 %v949, 1.0
    %v951 = vmul.f32 %v948, %v888
    %953 = vrot.lane.b32.xlu0 %v950, 64
    %v954 = vpop.permute.xlu0 %953
    %v956 = vmul.f32 %v948, %v954
    %958 = vrot.lane.b32.xlu0 %v956, 32
    %v959 = vpop.permute.xlu0 %958
    %v961 = vadd.f32 %v951, %v959
    %v962 = vtanh.pop %v961
    %964 = vrot.lane.b32.xlu0 %v962, 64
    %v965 = vpop.permute.xlu0 %964
    %v967 = vmul.f32 %v948, %v965
    %v968 = vpack.c.bf16 %v967, %v967
    %v969 = vld [vmem:[%s3] sm:$0xf]
    %v970 = vld [vmem:[%s3 + $0x4] sm:$0xf]
    %v971 = vld [vmem:[%s3 + $0x8] sm:$0xf]
    %v972 = vld [vmem:[%s3 + $0xc] sm:$0xf]
    %v973 = vld [vmem:[%s4] sm:$0xf]
    %v974 = vld [vmem:[%s4 + $0x4] sm:$0xf]
    %v975 = vld [vmem:[%s4 + $0x8] sm:$0xf]
    %v976 = vld [vmem:[%s4 + $0xc] sm:$0xf]
    %v977 = vld [vmem:[%s4 + $0x10] sm:$0x1]
    %v983 = vunpack.c.l.b16 %v973
    %v984 = vunpack.c.l.b16 %v974
    %v985 = vunpack.c.l.b16 %v975
    %v986 = vunpack.c.l.b16 %v976
    %v987 = vunpack.c.l.b16 %v977
    %v988 = vpack.c.b16 %v984, %v983
    %v989 = vpack.c.b16 %v986, %v985
    %v990 = vpack.c.b16 %v987, %v987
    %v994 = vand.u32 %v990, %v182
    %996 = vmatprep.subr.bf16.mxu0 0
    %997 = vmatpush1.bf16.msra.mxu0 %v988
    %998 = vmatprep.subr.bf16.mxu0 0
    %999 = vmatpush1.bf16.msra.mxu0 %v989
    %1000 = vmatprep.subr.bf16.mxu0 0
    %1001 = vmatpush1.bf16.msra.mxu0 %v994
    %1002 = vmatprep.subr.bf16.mxu0 0
    %1003 = vmatpush1.bf16.msra.mxu0 0
    %1004 = vmatprep.subr.bf16.mxu0 0
    %1005 = vmatpush1.bf16.msra.mxu0 0
    %1006 = vmatprep.subr.bf16.mxu0 0
    %1007 = vmatpush1.bf16.msra.mxu0 0
    %1008 = vmatprep.subr.bf16.mxu0 0
    %1009 = vmatpush1.bf16.msra.mxu0 0
    %1010 = vmatprep.subr.bf16.mxu0 0
    %1011 = vmatpush1.bf16.msra.mxu0 0
    %1012 = vmatprep.subr.bf16.mxu0 0
    %1013 = vmatpush1.bf16.msra.mxu0 0
    %1014 = vmatprep.subr.bf16.mxu0 0
    %1015 = vmatpush1.bf16.msra.mxu0 0
    %1016 = vmatprep.subr.bf16.mxu0 0
    %1017 = vmatpush1.bf16.msra.mxu0 0
    %1018 = vmatprep.subr.bf16.mxu0 0
    %1019 = vmatpush1.bf16.msra.mxu0 0
    %1020 = vmatprep.subr.bf16.mxu0 0
    %1021 = vmatpush1.bf16.msra.mxu0 0
    %1022 = vmatprep.subr.bf16.mxu0 0
    %1023 = vmatpush1.bf16.msra.mxu0 0
    %1024 = vmatprep.subr.bf16.mxu0 0
    %1025 = vmatpush1.bf16.msra.mxu0 0
    %1026 = vmatprep.subr.bf16.mxu0 0
    %1027 = vmatpush1.bf16.msra.mxu0 0
    %1028 = vmatprep.mubr.bf16.mxu0 0
    %1029 = vmatmul.mubr.bf16.gmra.mrb[0].mxu0 %v178
    %v1030 = vpop.f32.mrb[0].mxu0
    %v1031 = vadd.f32 0.0, %v1030
    %v1032 = vpop.f32.mrb[0].mxu0
    %v1033 = vpop.f32.mrb[0].mxu0
    %v1034 = vpop.f32.mrb[0].mxu0
    %1035 = vdwg.mxu0
    %1037 = vrot.lane.b32.xlu0 %v968, 32
    %v1038 = vpop.permute.xlu0 %1037
    %v1043 = vunpack.c.l.b16 %v969
    %v1044 = vunpack.c.l.b16 %v970
    %v1045 = vunpack.c.l.b16 %v971
    %v1046 = vunpack.c.l.b16 %v972
    %v1047 = vpack.c.b16 %v1044, %v1043
    %v1048 = vpack.c.b16 %v1046, %v1045
    %v1052 = vsel %vm387, %v1038, 0
    %1054 = vmatprep.subr.bf16.mxu0 0
    %1055 = vmatpush1.bf16.msra.mxu0 %v1047
    %1056 = vmatprep.subr.bf16.mxu0 0
    %1057 = vmatpush1.bf16.msra.mxu0 %v1048
    %1058 = vmatprep.subr.bf16.mxu0 0
    %1059 = vmatpush1.bf16.msra.mxu0 0
    %1060 = vmatprep.subr.bf16.mxu0 0
    %1061 = vmatpush1.bf16.msra.mxu0 0
    %1062 = vmatprep.subr.bf16.mxu0 0
    %1063 = vmatpush1.bf16.msra.mxu0 0
    %1064 = vmatprep.subr.bf16.mxu0 0
    %1065 = vmatpush1.bf16.msra.mxu0 0
    %1066 = vmatprep.subr.bf16.mxu0 0
    %1067 = vmatpush1.bf16.msra.mxu0 0
    %1068 = vmatprep.subr.bf16.mxu0 0
    %1069 = vmatpush1.bf16.msra.mxu0 0
    %1070 = vmatprep.subr.bf16.mxu0 0
    %1071 = vmatpush1.bf16.msra.mxu0 0
    %1072 = vmatprep.subr.bf16.mxu0 0
    %1073 = vmatpush1.bf16.msra.mxu0 0
    %1074 = vmatprep.subr.bf16.mxu0 0
    %1075 = vmatpush1.bf16.msra.mxu0 0
    %1076 = vmatprep.subr.bf16.mxu0 0
    %1077 = vmatpush1.bf16.msra.mxu0 0
    %1078 = vmatprep.subr.bf16.mxu0 0
    %1079 = vmatpush1.bf16.msra.mxu0 0
    %1080 = vmatprep.subr.bf16.mxu0 0
    %1081 = vmatpush1.bf16.msra.mxu0 0
    %1082 = vmatprep.subr.bf16.mxu0 0
    %1083 = vmatpush1.bf16.msra.mxu0 0
    %1084 = vmatprep.subr.bf16.mxu0 0
    %1085 = vmatpush1.bf16.msra.mxu0 0
    %1086 = vmatprep.mubr.bf16.mxu0 0
    %1087 = vmatmul.mubr.bf16.gmra.mrb[0].mxu0 %v1052
    %v1088 = vpop.f32.mrb[0].mxu0
    %v1089 = vadd.f32 %v1031, %v1088
    %v1090 = vpop.f32.mrb[0].mxu0
    %v1091 = vpop.f32.mrb[0].mxu0
    %v1092 = vpop.f32.mrb[0].mxu0
    %1093 = vdwg.mxu0
    %v1094 = vmax.f32 %v1089, 0.0
    %v1095 = vpack.c.bf16 %v1094, %v1094
    %v1096 = vld [vmem:[#allocation4] sm:$0xf]
    %v1097 = vld [vmem:[#allocation4 + $0x4] sm:$0xf]
    %v1098 = vld [vmem:[#allocation4 + $0x8] sm:$0xf]
    %v1099 = vld [vmem:[#allocation4 + $0xc] sm:$0xf]
    %v1100 = vld [vmem:[%s6] sm:$0x1]
    %v1102 = vlaneseq
    %v1103 = vshrl.u32 %v1102, 7
    %v1104 = vsub.s32 0, %v1103
    %v1105 = vrot.slane %v1100, %v1104
    %v1111 = vunpack.c.l.b16 %v1096
    %v1112 = vunpack.c.l.b16 %v1097
    %v1113 = vunpack.c.l.b16 %v1098
    %v1114 = vunpack.c.l.b16 %v1099
    %v1115 = vpack.c.b16 %v1112, %v1111
    %v1116 = vpack.c.b16 %v1114, %v1113
    %v1120 = vsel %vm387, %v1095, 0
    %1122 = vmatprep.subr.bf16.mxu0 0
    %1123 = vmatpush1.bf16.msra.mxu0 %v1115
    %1124 = vmatprep.subr.bf16.mxu0 0
    %1125 = vmatpush1.bf16.msra.mxu0 %v1116
    %1126 = vmatprep.subr.bf16.mxu0 0
    %1127 = vmatpush1.bf16.msra.mxu0 0
    %1128 = vmatprep.subr.bf16.mxu0 0
    %1129 = vmatpush1.bf16.msra.mxu0 0
    %1130 = vmatprep.subr.bf16.mxu0 0
    %1131 = vmatpush1.bf16.msra.mxu0 0
    %1132 = vmatprep.subr.bf16.mxu0 0
    %1133 = vmatpush1.bf16.msra.mxu0 0
    %1134 = vmatprep.subr.bf16.mxu0 0
    %1135 = vmatpush1.bf16.msra.mxu0 0
    %1136 = vmatprep.subr.bf16.mxu0 0
    %1137 = vmatpush1.bf16.msra.mxu0 0
    %1138 = vmatprep.subr.bf16.mxu0 0
    %1139 = vmatpush1.bf16.msra.mxu0 0
    %1140 = vmatprep.subr.bf16.mxu0 0
    %1141 = vmatpush1.bf16.msra.mxu0 0
    %1142 = vmatprep.subr.bf16.mxu0 0
    %1143 = vmatpush1.bf16.msra.mxu0 0
    %1144 = vmatprep.subr.bf16.mxu0 0
    %1145 = vmatpush1.bf16.msra.mxu0 0
    %1146 = vmatprep.subr.bf16.mxu0 0
    %1147 = vmatpush1.bf16.msra.mxu0 0
    %1148 = vmatprep.subr.bf16.mxu0 0
    %1149 = vmatpush1.bf16.msra.mxu0 0
    %1150 = vmatprep.subr.bf16.mxu0 0
    %1151 = vmatpush1.bf16.msra.mxu0 0
    %1152 = vmatprep.subr.bf16.mxu0 0
    %1153 = vmatpush1.bf16.msra.mxu0 0
    %1154 = vmatprep.mubr.bf16.mxu0 0
    %1155 = vmatmul.mubr.bf16.gmra.mrb[0].mxu0 %v1120
    %v1156 = vpop.f32.mrb[0].mxu0
    %v1157 = vadd.f32 %v1105, %v1156
    %v1158 = vpop.f32.mrb[0].mxu0
    %v1159 = vpop.f32.mrb[0].mxu0
    %v1160 = vpop.f32.mrb[0].mxu0
    %1161 = vdwg.mxu0
    %1162 = vst.msk [vmem:[%s7] sm:$0xff] %vm387, %v1157
    // Predicated region
    $region38: #{mylstm_forward.1} parent=1 // pred_check
      _
    $region39: #{mylstm_forward.1} parent=1 // pred_check_branch
      %1164 = sbr.rel (0) target = $region41
    $region40: #{mylstm_forward.1} parent=1 // pred_region
      _
    $region41: #{mylstm_forward.1} parent=1 // pred_fallthru
      _
    // Predicated region
    $region42: #{mylstm_forward.1} parent=1 // pred_check
      _
    $region43: #{mylstm_forward.1} parent=1 // pred_check_branch
      %1166 = sbr.rel (0) target = $region45
    $region44: #{mylstm_forward.1} parent=1 // pred_region
      _
    $region45: #{mylstm_forward.1} parent=1 // pred_fallthru
      _
    %1167 = vsyncpa [#allocation3], 1
    %1168 = vsyncpa [#allocation5], 1

</llo_original>
